<compile_context>
chip_gen: v7x
topology: tpu7x:2x2x1
jax: 0.10.0
libtpu: 0.0.40
codegen_flags: <defaults>
</compile_context>

<pallas_src>
import functools

import jax
import jax.numpy as jnp
from jax.experimental import pallas as pl
from jax.experimental.pallas import tpu as pltpu


def _round_up(x, m):
    return ((x + m - 1) // m) * m


def message_kernel(tbl_ref, cnt_ref,                      # scalar prefetch (SMEM)
                   src_ref, S_ref, Vec_ref, rbf_ref, vn_ref,
                   w1_ref, b1_ref, w2_ref, b2_ref, wr_ref,
                   out_ref,                               # resident [tN, 4Fp] f32
                   m_ref, iota_ref):                      # VMEM scratch
    """One (node tile, edge tile): per-edge MLP + fused one-hot scatter matmul."""
    i = pl.program_id(0)                 # node tile
    j = pl.program_id(1)                 # edge tile within this node tile's range
    Fp = w1_ref.shape[1]                 # padded feature width (multiple of 128)
    tN = out_ref.shape[0]                # node tile size

    # Zero the resident accumulator and (re)fill the local node-id iota at the
    # start of every node tile's edge loop (megacore-safe: runs for every i).
    @pl.when(j == 0)
    def _init():
        out_ref[...] = jnp.zeros_like(out_ref)
        iota_ref[...] = jax.lax.broadcasted_iota(jnp.int32, iota_ref.shape, 0)

    # Skip edge tiles outside this node tile's (sorted) edge range.
    @pl.when(j < cnt_ref[i])
    def _compute():
        # ---- per-edge MLP (bf16 MXU inputs, f32 accumulate) ----------------
        S = S_ref[...]                                               # [tE, Fp] bf16
        h = jnp.dot(S, w1_ref[...],
                    preferred_element_type=jnp.float32) + b1_ref[...]
        h = h * jax.nn.sigmoid(h)                                    # SiLU (f32)
        hb = h.astype(jnp.bfloat16)
        phi = (jnp.dot(hb, w2_ref[...],
                       preferred_element_type=jnp.float32) + b2_ref[...])  # [tE,3Fp]

        # ---- cutoff-gated rbf: fcut & bias already folded into rbf/wr ------
        W = jnp.dot(rbf_ref[...], wr_ref[...],
                    preferred_element_type=jnp.float32)              # [tE, 3Fp]
        phiW = phi * W                                               # f32

        # Fp is a multiple of 128 -> lane-aligned band slices.
        Ws = phiW[:, 0 * Fp:1 * Fp]
        Wvv = phiW[:, 1 * Fp:2 * Fp].astype(jnp.bfloat16)
        Wvs = phiW[:, 2 * Fp:3 * Fp].astype(jnp.bfloat16)

        # ---- build message slab M = [Ws | dVec_x | dVec_y | dVec_z] --------
        # directly in a bf16 VMEM scratch (no f32 concat temporary).
        m_ref[:, 0:Fp] = Ws.astype(jnp.bfloat16)
        Vec = Vec_ref[...]                                           # [tE, 3Fp] bf16
        vn = vn_ref[...]                                             # [tE, 4] f32
        for c in range(3):
            vn_c = vn[:, c:c + 1].astype(jnp.bfloat16)               # [tE, 1]
            vec_c = Vec[:, c * Fp:(c + 1) * Fp]                      # [tE, Fp] bf16
            # bf16 band math (v6e/v7x VALU); f32 scatter-accumulate below.
            m_ref[:, (c + 1) * Fp:(c + 2) * Fp] = Wvv * vec_c + vn_c * Wvs

        # ---- scatter-add restricted to THIS node tile, one MXU matmul ------
        src_local = src_ref[0] - i * tN                              # [1, tE] int32
        onehotT = (iota_ref[...] == src_local).astype(jnp.bfloat16)  # [tN, tE]
        out_ref[...] += jnp.dot(onehotT, m_ref[...],
                                preferred_element_type=jnp.float32)


def init_params(key, num_features, num_rbf_features):
    F, R = num_features, num_rbf_features
    ks = jax.random.split(key, 6)
    # Math layout [in, out]; y = x @ W + b.
    w1 = jax.random.normal(ks[0], (F, F), jnp.float32) * 0.1
    b1 = jax.random.normal(ks[1], (1, F), jnp.float32) * 0.1
    w2 = jax.random.normal(ks[2], (F, 3 * F), jnp.float32) * 0.1
    b2 = jax.random.normal(ks[3], (1, 3 * F), jnp.float32) * 0.1
    wr = jax.random.normal(ks[4], (R, 3 * F), jnp.float32) * 0.1
    br = jax.random.normal(ks[5], (1, 3 * F), jnp.float32) * 0.1
    return (w1, b1, w2, b2, wr, br)


def message_block_pallas(params, s, vec, edge_indexes, edge_vector,
                         edge_distance, edge_rbf, cutoff_dist, *,
                         edge_tile=1024, node_tile=256):
    w1, b1, w2, b2, wr, br = params
    N, F = s.shape
    R = edge_rbf.shape[-1]
    E = edge_indexes.shape[1]

    LANE, SUB = 128, 16                       # lane width / bf16 sublane quantum
    f32, bf16 = jnp.float32, jnp.bfloat16

    Fp = _round_up(F, LANE)                   # padded feature width
    tN = _round_up(min(node_tile, N), 8)      # node tile (scatter rows)
    Np = _round_up(N, tN)
    nN = Np // tN
    tE = _round_up(min(edge_tile, _round_up(E, SUB)), SUB)
    E_pad = _round_up(E, tE)
    n_etiles = E_pad // tE
    Ra = _round_up(R + 1, 8)                  # rbf + folded-bias column, padded

    # ---- weights: pad F->Fp, repack 3F outputs into Fp bands, fold br into
    #      an augmented rbf weight row (cutoff gate is folded on the data) ---
    w1p = jnp.zeros((Fp, Fp), f32).at[:F, :F].set(w1).astype(bf16)
    b1p = jnp.zeros((1, Fp), f32).at[:, :F].set(b1)
    w2p = jnp.zeros((Fp, 3 * Fp), f32)
    b2p = jnp.zeros((1, 3 * Fp), f32)
    wrp = jnp.zeros((Ra, 3 * Fp), f32)
    for k in range(3):
        w2p = w2p.at[:F, k * Fp:k * Fp + F].set(w2[:, k * F:(k + 1) * F])
        b2p = b2p.at[:, k * Fp:k * Fp + F].set(b2[:, k * F:(k + 1) * F])
        wrp = wrp.at[:R, k * Fp:k * Fp + F].set(wr[:, k * F:(k + 1) * F])
        wrp = wrp.at[R, k * Fp:k * Fp + F].set(br[0, k * F:(k + 1) * F])
    w2p = w2p.astype(bf16)
    wrp = wrp.astype(bf16)

    # ---- sort edges by scatter target (src) so each node tile owns a
    #      contiguous edge range ---------------------------------------------
    src = edge_indexes[0].astype(jnp.int32)
    dst = edge_indexes[1].astype(jnp.int32)
    order = jnp.argsort(src)
    src_s = src[order]
    dst_s = dst[order]
    ev_s = edge_vector.astype(f32)[order]
    d_s = edge_distance.astype(f32)[order]
    rbf_s = edge_rbf.astype(f32)[order]

    # Cosine cutoff computed once here and folded into the rbf stream.
    fcut = 0.5 * (jnp.cos(d_s * (jnp.pi / cutoff_dist)) + 1.0)
    fcut = jnp.where(d_s < cutoff_dist, fcut, 0.0)
    # NOTE: same precondition as the PyTorch module -- edge_distance > 0.
    vn_s = ev_s / d_s[:, None]

    # Pad edges: padded rows have zero rbf_aug (-> zero message) and src = Np
    # (matches no node id, and keeps the sorted order / tile ranges tight).
    pe = E_pad - E
    src_p = jnp.concatenate([src_s, jnp.full((pe,), Np, jnp.int32)])
    dst_p = jnp.concatenate([dst_s, jnp.zeros((pe,), jnp.int32)])
    fcut_p = jnp.concatenate([fcut, jnp.zeros((pe,), f32)])
    rbf_p = jnp.concatenate([rbf_s, jnp.zeros((pe, R), f32)])
    vn_p = jnp.concatenate([vn_s, jnp.zeros((pe, 3), f32)])

    rbf_aug = jnp.zeros((E_pad, Ra), f32)
    rbf_aug = rbf_aug.at[:, :R].set(rbf_p * fcut_p[:, None])
    rbf_aug = rbf_aug.at[:, R].set(fcut_p)
    rbf_aug = rbf_aug.astype(bf16)

    vnpack = jnp.zeros((E_pad, 4), f32).at[:, :3].set(vn_p)   # merged scalar stream

    # Gathers (XLA glue) -- lane-padded, bf16, no big transposes.
    s_pad = jnp.zeros((N, Fp), f32).at[:, :F].set(s).astype(bf16)
    S = s_pad[dst_p]                                           # [E_pad, Fp]
    vec_pad = (jnp.zeros((N, 3, Fp), f32).at[:, :, :F].set(vec)
               .reshape(N, 3 * Fp).astype(bf16))
    Vec2 = vec_pad[dst_p]                                      # [E_pad, 3Fp]
    src3 = src_p.reshape(n_etiles, 1, tE)                      # lanes = edges

    # ---- per-node-tile edge-tile ranges (scalar prefetch tables) -----------
    bounds = jnp.arange(nN + 1, dtype=jnp.int32) * tN
    lohi = jnp.searchsorted(src_p, bounds, side="left").astype(jnp.int32)
    lo, hi = lohi[:-1], lohi[1:]
    has = hi > lo
    first_t = jnp.where(has, lo // tE, 0)
    last_t = jnp.where(has, jnp.maximum(hi - 1, 0) // tE, -1)
    cnt = jnp.where(has, last_t - first_t + 1, 0).astype(jnp.int32)
    GE = max(int(jnp.max(cnt)), 1)            # concrete: wrapper is eager-only
    tbl = jnp.minimum(first_t[:, None] + jnp.arange(GE, dtype=jnp.int32)[None, :],
                      n_etiles - 1).astype(jnp.int32).reshape(nN * GE)

    # ---- index maps (prefetch refs are trailing positional args) -----------
    def emap_row(i, j, tbl_ref, cnt_ref):     # edge-major arrays [E_pad, X]
        return (tbl_ref[i * GE + j], 0)

    def emap_src(i, j, tbl_ref, cnt_ref):     # src3 [n_etiles, 1, tE]
        return (tbl_ref[i * GE + j], 0, 0)

    def wmap(i, j, tbl_ref, cnt_ref):         # grid-invariant weights
        return (0, 0)

    def omap(i, j, tbl_ref, cnt_ref):         # resident accumulator per node tile
        return (i, 0)

    grid_spec = pltpu.PrefetchScalarGridSpec(
        num_scalar_prefetch=2,
        grid=(nN, GE),
        in_specs=[
            pl.BlockSpec((1, 1, tE), emap_src),       # src rows   (int32)
            pl.BlockSpec((tE, Fp), emap_row),         # S          (bf16)
            pl.BlockSpec((tE, 3 * Fp), emap_row),     # Vec slab   (bf16)
            pl.BlockSpec((tE, Ra), emap_row),         # rbf_aug    (bf16)
            pl.BlockSpec((tE, 4), emap_row),          # vn pack    (f32)
            pl.BlockSpec((Fp, Fp), wmap),             # w1
            pl.BlockSpec((1, Fp), wmap),              # b1
            pl.BlockSpec((Fp, 3 * Fp), wmap),         # w2 (banded)
            pl.BlockSpec((1, 3 * Fp), wmap),          # b2
            pl.BlockSpec((Ra, 3 * Fp), wmap),         # wr_aug (bias folded)
        ],
        out_specs=pl.BlockSpec((tN, 4 * Fp), omap),
        scratch_shapes=[
            pltpu.VMEM((tE, 4 * Fp), bf16),           # fused message slab M
            pltpu.VMEM((tN, tE), jnp.int32),          # hoisted local node iota
        ],
    )

    # ---- VMEM budget (double-buffered inputs/outputs + weights + scratch),
    #      capped at 48 MiB so v7x (64 MiB physical) keeps headroom ----------
    def _lane(x):
        return _round_up(x, LANE)
    edge_buf = (tE * Fp * 2 + tE * 3 * Fp * 2 + tE * _lane(Ra) * 2
                + tE * _lane(4) * 4 + 8 * tE * 4)
    weight_buf = (Fp * Fp * 2 + 8 * Fp * 4 + Fp * 3 * Fp * 2
                  + 8 * 3 * Fp * 4 + Ra * 3 * Fp * 2)
    out_buf = tN * 4 * Fp * 4
    scratch_buf = tE * 4 * Fp * 2 + tN * _lane(tE) * 4
    est = 2 * (edge_buf + weight_buf + out_buf) + scratch_buf
    vmem_limit = int(min(48 * 1024 * 1024, max(16 * 1024 * 1024, (est * 5) // 4)))

    out = pl.pallas_call(
        message_kernel,
        out_shape=jax.ShapeDtypeStruct((Np, 4 * Fp), f32),
        grid_spec=grid_spec,
        compiler_params=pltpu.CompilerParams(
            dimension_semantics=("parallel", "arbitrary"),   # node / edge-reduction
            vmem_limit_bytes=vmem_limit,
        ),
    )(tbl, cnt, src3, S, Vec2, rbf_aug, vnpack, w1p, b1p, w2p, b2p, wrp)

    # Un-pad: out = [ds | dvec_x | dvec_y | dvec_z] in Fp-wide bands.
    ds = out[:N, :F]
    dvec = out[:N, Fp:].reshape(N, 3, Fp)[:, :, :F]
    return ds, dvec


def message_block_ref(params, s, vec, edge_indexes, edge_vector,
                      edge_distance, edge_rbf, cutoff_dist):
    """Pure-JAX f32 reference mirroring the PyTorch forward semantics."""
    w1, b1, w2, b2, wr, br = params
    N, F = s.shape
    src, dst = edge_indexes[0], edge_indexes[1]
    S = s[dst]
    Vec = vec[dst]                                          # [E, 3, F]
    h = S @ w1 + b1[0]
    h = h * jax.nn.sigmoid(h)
    phi = h @ w2 + b2[0]
    rbf_lin = edge_rbf @ wr + br[0]
    fcut = 0.5 * (jnp.cos(edge_distance * jnp.pi / cutoff_dist) + 1.0)
    fcut = fcut * (edge_distance < cutoff_dist).astype(jnp.float32)
    W = rbf_lin * fcut[:, None]
    Ws, Wvv, Wvs = jnp.split(phi * W, 3, axis=-1)
    ds = jnp.zeros((N, F), jnp.float32).at[src].add(Ws)
    vec_n = edge_vector / edge_distance[:, None]
    dVec = Wvv[:, None, :] * Vec + vec_n[:, :, None] * Wvs[:, None, :]
    dvec = jnp.zeros((N, 3, F), jnp.float32).at[src].add(dVec)
    return ds, dvec


if __name__ == "__main__":
    num_atoms = 32
    num_features = 32
    num_rbf_features = 16
    num_edges = 128
    cutoff_dist = 5.0

    key = jax.random.PRNGKey(0)
    kp, k1, k2, k3, k4, k5 = jax.random.split(key, 6)

    params = init_params(kp, num_features, num_rbf_features)

    s = jax.random.normal(k1, (num_atoms, num_features), jnp.float32)
    vec = jax.random.normal(k2, (num_atoms, 3, num_features), jnp.float32)
    edge_indexes = jax.random.randint(k3, (2, num_edges), 0, num_atoms, jnp.int32)
    edge_vector = jax.random.normal(k4, (num_edges, 3), jnp.float32)
    edge_distance = jnp.linalg.norm(edge_vector, axis=-1)   # strictly positive
    edge_rbf = jax.random.normal(k5, (num_edges, num_rbf_features), jnp.float32)

    ds_ref, dvec_ref = message_block_ref(params, s, vec, edge_indexes,
                                         edge_vector, edge_distance, edge_rbf,
                                         cutoff_dist)

    # Small tiles: 4 node tiles x several edge tiles each -> exercises sorted
    # ranges, scalar-prefetch index maps, pl.when skipping and accumulation.
    ds, dvec = message_block_pallas(params, s, vec, edge_indexes, edge_vector,
                                    edge_distance, edge_rbf, cutoff_dist,
                                    edge_tile=32, node_tile=8)
    jax.block_until_ready((ds, dvec))
    assert ds.shape == (num_atoms, num_features)
    assert dvec.shape == (num_atoms, 3, num_features)
    # bf16 MXU inputs (f32 accumulation) shift results at the ~1e-2 relative
    # level vs. the pure-f32 reference; tolerance reflects that while still
    # catching structural errors.
    assert jnp.allclose(ds, ds_ref, rtol=5e-2, atol=5e-2), \
        float(jnp.max(jnp.abs(ds - ds_ref)))
    assert jnp.allclose(dvec, dvec_ref, rtol=5e-2, atol=5e-2), \
        float(jnp.max(jnp.abs(dvec - dvec_ref)))

    # Default (large) tiles: degenerate single-tile grid.
    ds2, dvec2 = message_block_pallas(params, s, vec, edge_indexes, edge_vector,
                                      edge_distance, edge_rbf, cutoff_dist)
    jax.block_until_ready((ds2, dvec2))
    assert jnp.allclose(ds2, ds_ref, rtol=5e-2, atol=5e-2), \
        float(jnp.max(jnp.abs(ds2 - ds_ref)))
    assert jnp.allclose(dvec2, dvec_ref, rtol=5e-2, atol=5e-2), \
        float(jnp.max(jnp.abs(dvec2 - dvec_ref)))

    print("KERNEL_OK")
</pallas_src>

<mosaic_0001>
module attributes {stable_mosaic.version = 11 : i64} {
  func.func @message_kernel(%arg0: i32, %arg1: i32, %arg2: memref<8xi32, #tpu.memory_space<smem>>, %arg3: memref<4xi32, #tpu.memory_space<smem>>, %arg4: memref<1x1x32xi32, #tpu.memory_space<vmem>>, %arg5: memref<32x128xbf16, #tpu.memory_space<vmem>>, %arg6: memref<32x384xbf16, #tpu.memory_space<vmem>>, %arg7: memref<32x24xbf16, #tpu.memory_space<vmem>>, %arg8: memref<32x4xf32, #tpu.memory_space<vmem>>, %arg9: memref<128x128xbf16, #tpu.memory_space<vmem>>, %arg10: memref<1x128xf32, #tpu.memory_space<vmem>>, %arg11: memref<128x384xbf16, #tpu.memory_space<vmem>>, %arg12: memref<1x384xf32, #tpu.memory_space<vmem>>, %arg13: memref<24x384xbf16, #tpu.memory_space<vmem>>, %arg14: memref<8x512xf32, #tpu.memory_space<vmem>>, %arg15: memref<32x512xbf16, #tpu.memory_space<vmem>>, %arg16: memref<8x32xi32, #tpu.memory_space<vmem>>) attributes {dimension_semantics = [#tpu.dimension_semantics<parallel>, #tpu.dimension_semantics<arbitrary>], iteration_bounds = array<i64: 4, 2>, scalar_prefetch = 2 : i64, scratch_operands = 2 : i64, tpu.core_type = #tpu.core_type<tc>, window_params = [{transform_indices = @transform_0, window_bounds = array<i64: 1, 1, 32>}, {transform_indices = @transform_1, window_bounds = array<i64: 32, 128>}, {transform_indices = @transform_2, window_bounds = array<i64: 32, 384>}, {transform_indices = @transform_3, window_bounds = array<i64: 32, 24>}, {transform_indices = @transform_4, window_bounds = array<i64: 32, 4>}, {pipeline_mode = #tpu.pipeline_mode<synchronous>, transform_indices = @transform_5, window_bounds = array<i64: 128, 128>}, {pipeline_mode = #tpu.pipeline_mode<synchronous>, transform_indices = @transform_6, window_bounds = array<i64: 1, 128>}, {pipeline_mode = #tpu.pipeline_mode<synchronous>, transform_indices = @transform_7, window_bounds = array<i64: 128, 384>}, {pipeline_mode = #tpu.pipeline_mode<synchronous>, transform_indices = @transform_8, window_bounds = array<i64: 1, 384>}, {pipeline_mode = #tpu.pipeline_mode<synchronous>, transform_indices = @transform_9, window_bounds = array<i64: 24, 384>}, {transform_indices = @transform_10, window_bounds = array<i64: 8, 512>}]} {
    %c0_i32 = arith.constant 0 : i32
    %0 = arith.cmpi eq, %arg1, %c0_i32 : i32
    %1 = arith.extui %0 : i1 to i32
    %c0_i32_0 = arith.constant 0 : i32
    %2 = arith.cmpi ne, %1, %c0_i32_0 : i32
    scf.if %2 {
      %cst = arith.constant 0.000000e+00 : f32
      %8 = vector.broadcast %cst : f32 to vector<8x512xf32>
      %c0 = arith.constant 0 : index
      %c0_2 = arith.constant 0 : index
      %9 = vector.load %arg14[%c0, %c0_2] : memref<8x512xf32, #tpu.memory_space<vmem>>, vector<8x512xf32>
      tpu.vector_store %arg14[%c0, %c0_2], %8 {strides = array<i32>} : memref<8x512xf32, #tpu.memory_space<vmem>>, vector<8x512xf32>,
      %10 = tpu.iota {dimensions = array<i32: 0>} : vector<8x32xi32>
      %c0_3 = arith.constant 0 : index
      %c0_4 = arith.constant 0 : index
      %11 = vector.load %arg16[%c0_3, %c0_4] : memref<8x32xi32, #tpu.memory_space<vmem>>, vector<8x32xi32>
      tpu.vector_store %arg16[%c0_3, %c0_4], %10 {strides = array<i32>} : memref<8x32xi32, #tpu.memory_space<vmem>>, vector<8x32xi32>,
    } else {
    }
    %3 = arith.index_cast %arg0 : i32 to index
    %4 = memref.load %arg3[%3] : memref<4xi32, #tpu.memory_space<smem>>
    %5 = arith.cmpi slt, %arg1, %4 : i32
    %6 = arith.extui %5 : i1 to i32
    %c0_i32_1 = arith.constant 0 : i32
    %7 = arith.cmpi ne, %6, %c0_i32_1 : i32
    scf.if %7 {
      %c0 = arith.constant 0 : index
      %c0_2 = arith.constant 0 : index
      %8 = vector.load %arg5[%c0, %c0_2] : memref<32x128xbf16, #tpu.memory_space<vmem>>, vector<32x128xbf16>
      %c0_3 = arith.constant 0 : index
      %c0_4 = arith.constant 0 : index
      %9 = vector.load %arg9[%c0_3, %c0_4] : memref<128x128xbf16, #tpu.memory_space<vmem>>, vector<128x128xbf16>
      %cst = arith.constant dense<0.000000e+00> : vector<32x128xf32>
      %10 = tpu.matmul %8, %9, %cst {dimension_numbers = #tpu.dot_dimension_numbers<[1], [0], [0], [1], [0, 0, 1, 1], [], []>} : vector<32x128xbf16>, vector<128x128xbf16>, vector<32x128xf32> -> vector<32x128xf32>
      %c0_5 = arith.constant 0 : index
      %c0_6 = arith.constant 0 : index
      %11 = vector.load %arg10[%c0_5, %c0_6] : memref<1x128xf32, #tpu.memory_space<vmem>>, vector<1x128xf32>
      %12 = vector.broadcast %11 : vector<1x128xf32> to vector<32x128xf32>
      %13 = arith.addf %10, %12 : vector<32x128xf32>
      %14 = arith.negf %13 : vector<32x128xf32>
      %15 = math.exp %14 : vector<32x128xf32>
      %cst_7 = arith.constant 1.000000e+00 : f32
      %16 = vector.broadcast %cst_7 : f32 to vector<32x128xf32>
      %17 = arith.addf %16, %15 : vector<32x128xf32>
      %18 = arith.divf %16, %17 : vector<32x128xf32>
      %19 = arith.mulf %13, %18 : vector<32x128xf32>
      %20 = arith.truncf %19 : vector<32x128xf32> to vector<32x128xbf16>
      %c0_8 = arith.constant 0 : index
      %c0_9 = arith.constant 0 : index
      %21 = vector.load %arg11[%c0_8, %c0_9] : memref<128x384xbf16, #tpu.memory_space<vmem>>, vector<128x384xbf16>
      %cst_10 = arith.constant dense<0.000000e+00> : vector<32x384xf32>
      %22 = tpu.matmul %20, %21, %cst_10 {dimension_numbers = #tpu.dot_dimension_numbers<[1], [0], [0], [1], [0, 0, 1, 1], [], []>} : vector<32x128xbf16>, vector<128x384xbf16>, vector<32x384xf32> -> vector<32x384xf32>
      %c0_11 = arith.constant 0 : index
      %c0_12 = arith.constant 0 : index
      %23 = vector.load %arg12[%c0_11, %c0_12] : memref<1x384xf32, #tpu.memory_space<vmem>>, vector<1x384xf32>
      %24 = vector.broadcast %23 : vector<1x384xf32> to vector<32x384xf32>
      %25 = arith.addf %22, %24 : vector<32x384xf32>
      %c0_13 = arith.constant 0 : index
      %c0_14 = arith.constant 0 : index
      %26 = vector.load %arg7[%c0_13, %c0_14] : memref<32x24xbf16, #tpu.memory_space<vmem>>, vector<32x24xbf16>
      %c0_15 = arith.constant 0 : index
      %c0_16 = arith.constant 0 : index
      %27 = vector.load %arg13[%c0_15, %c0_16] : memref<24x384xbf16, #tpu.memory_space<vmem>>, vector<24x384xbf16>
      %cst_17 = arith.constant dense<0.000000e+00> : vector<32x384xf32>
      %28 = tpu.matmul %26, %27, %cst_17 {dimension_numbers = #tpu.dot_dimension_numbers<[1], [0], [0], [1], [0, 0, 1, 1], [], []>} : vector<32x24xbf16>, vector<24x384xbf16>, vector<32x384xf32> -> vector<32x384xf32>
      %29 = arith.mulf %25, %28 : vector<32x384xf32>
      %30 = vector.extract_strided_slice %29 {offsets = [0, 0], sizes = [32, 128], strides = [1, 1]} : vector<32x384xf32> to vector<32x128xf32>
      %31 = vector.extract_strided_slice %29 {offsets = [0, 128], sizes = [32, 128], strides = [1, 1]} : vector<32x384xf32> to vector<32x128xf32>
      %32 = arith.truncf %31 : vector<32x128xf32> to vector<32x128xbf16>
      %33 = vector.extract_strided_slice %29 {offsets = [0, 256], sizes = [32, 128], strides = [1, 1]} : vector<32x384xf32> to vector<32x128xf32>
      %34 = arith.truncf %33 : vector<32x128xf32> to vector<32x128xbf16>
      %35 = arith.truncf %30 : vector<32x128xf32> to vector<32x128xbf16>
      %c0_18 = arith.constant 0 : index
      %c0_19 = arith.constant 0 : index
      %36 = vector.load %arg15[%c0_18, %c0_19] : memref<32x512xbf16, #tpu.memory_space<vmem>>, vector<32x128xbf16>
      tpu.vector_store %arg15[%c0_18, %c0_19], %35 {strides = array<i32>} : memref<32x512xbf16, #tpu.memory_space<vmem>>, vector<32x128xbf16>,
      %c0_20 = arith.constant 0 : index
      %c0_21 = arith.constant 0 : index
      %37 = vector.load %arg6[%c0_20, %c0_21] : memref<32x384xbf16, #tpu.memory_space<vmem>>, vector<32x384xbf16>
      %c0_22 = arith.constant 0 : index
      %c0_23 = arith.constant 0 : index
      %38 = vector.load %arg8[%c0_22, %c0_23] : memref<32x4xf32, #tpu.memory_space<vmem>>, vector<32x4xf32>
      %39 = vector.extract_strided_slice %38 {offsets = [0, 0], sizes = [32, 1], strides = [1, 1]} : vector<32x4xf32> to vector<32x1xf32>
      %40 = arith.truncf %39 : vector<32x1xf32> to vector<32x1xbf16>
      %41 = vector.extract_strided_slice %37 {offsets = [0, 0], sizes = [32, 128], strides = [1, 1]} : vector<32x384xbf16> to vector<32x128xbf16>
      %42 = arith.mulf %32, %41 : vector<32x128xbf16>
      %43 = vector.broadcast %40 : vector<32x1xbf16> to vector<32x128xbf16>
      %44 = arith.mulf %43, %34 : vector<32x128xbf16>
      %45 = arith.addf %42, %44 : vector<32x128xbf16>
      %c0_24 = arith.constant 0 : index
      %c128 = arith.constant 128 : index
      %46 = vector.load %arg15[%c0_24, %c128] : memref<32x512xbf16, #tpu.memory_space<vmem>>, vector<32x128xbf16>
      tpu.vector_store %arg15[%c0_24, %c128], %45 {strides = array<i32>} : memref<32x512xbf16, #tpu.memory_space<vmem>>, vector<32x128xbf16>,
      %47 = vector.extract_strided_slice %38 {offsets = [0, 1], sizes = [32, 1], strides = [1, 1]} : vector<32x4xf32> to vector<32x1xf32>
      %48 = arith.truncf %47 : vector<32x1xf32> to vector<32x1xbf16>
      %49 = vector.extract_strided_slice %37 {offsets = [0, 128], sizes = [32, 128], strides = [1, 1]} : vector<32x384xbf16> to vector<32x128xbf16>
      %50 = arith.mulf %32, %49 : vector<32x128xbf16>
      %51 = vector.broadcast %48 : vector<32x1xbf16> to vector<32x128xbf16>
      %52 = arith.mulf %51, %34 : vector<32x128xbf16>
      %53 = arith.addf %50, %52 : vector<32x128xbf16>
      %c0_25 = arith.constant 0 : index
      %c256 = arith.constant 256 : index
      %54 = vector.load %arg15[%c0_25, %c256] : memref<32x512xbf16, #tpu.memory_space<vmem>>, vector<32x128xbf16>
      tpu.vector_store %arg15[%c0_25, %c256], %53 {strides = array<i32>} : memref<32x512xbf16, #tpu.memory_space<vmem>>, vector<32x128xbf16>,
      %55 = vector.extract_strided_slice %38 {offsets = [0, 2], sizes = [32, 1], strides = [1, 1]} : vector<32x4xf32> to vector<32x1xf32>
      %56 = arith.truncf %55 : vector<32x1xf32> to vector<32x1xbf16>
      %57 = vector.extract_strided_slice %37 {offsets = [0, 256], sizes = [32, 128], strides = [1, 1]} : vector<32x384xbf16> to vector<32x128xbf16>
      %58 = arith.mulf %32, %57 : vector<32x128xbf16>
      %59 = vector.broadcast %56 : vector<32x1xbf16> to vector<32x128xbf16>
      %60 = arith.mulf %59, %34 : vector<32x128xbf16>
      %61 = arith.addf %58, %60 : vector<32x128xbf16>
      %c0_26 = arith.constant 0 : index
      %c384 = arith.constant 384 : index
      %62 = vector.load %arg15[%c0_26, %c384] : memref<32x512xbf16, #tpu.memory_space<vmem>>, vector<32x128xbf16>
      tpu.vector_store %arg15[%c0_26, %c384], %61 {strides = array<i32>} : memref<32x512xbf16, #tpu.memory_space<vmem>>, vector<32x128xbf16>,
      %c0_27 = arith.constant 0 : index
      %c0_28 = arith.constant 0 : index
      %c0_29 = arith.constant 0 : index
      %63 = vector.load %arg4[%c0_27, %c0_28, %c0_29] : memref<1x1x32xi32, #tpu.memory_space<vmem>>, vector<1x1x32xi32>
      %64 = vector.shape_cast %63 : vector<1x1x32xi32> to vector<1x32xi32>
      %c8_i32 = arith.constant 8 : i32
      %65 = arith.muli %arg0, %c8_i32 : i32
      %66 = vector.broadcast %65 : i32 to vector<1x32xi32>
      %67 = arith.subi %64, %66 : vector<1x32xi32>
      %c0_30 = arith.constant 0 : index
      %c0_31 = arith.constant 0 : index
      %68 = vector.load %arg16[%c0_30, %c0_31] : memref<8x32xi32, #tpu.memory_space<vmem>>, vector<8x32xi32>
      %69 = vector.broadcast %67 : vector<1x32xi32> to vector<8x32xi32>
      %70 = arith.cmpi eq, %68, %69 : vector<8x32xi32>
      %71 = arith.extui %70 : vector<8x32xi1> to vector<8x32xi32>
      %72 = arith.sitofp %71 : vector<8x32xi32> to vector<8x32xf32>
      %73 = arith.truncf %72 : vector<8x32xf32> to vector<8x32xbf16>
      %c0_32 = arith.constant 0 : index
      %c0_33 = arith.constant 0 : index
      %74 = vector.load %arg14[%c0_32, %c0_33] : memref<8x512xf32, #tpu.memory_space<vmem>>, vector<8x512xf32>
      %c0_34 = arith.constant 0 : index
      %c0_35 = arith.constant 0 : index
      %75 = vector.load %arg15[%c0_34, %c0_35] : memref<32x512xbf16, #tpu.memory_space<vmem>>, vector<32x512xbf16>
      %cst_36 = arith.constant dense<0.000000e+00> : vector<8x512xf32>
      %76 = tpu.matmul %73, %75, %cst_36 {dimension_numbers = #tpu.dot_dimension_numbers<[1], [0], [0], [1], [0, 0, 1, 1], [], []>} : vector<8x32xbf16>, vector<32x512xbf16>, vector<8x512xf32> -> vector<8x512xf32>
      %77 = arith.addf %74, %76 : vector<8x512xf32>
      %c0_37 = arith.constant 0 : index
      %c0_38 = arith.constant 0 : index
      %78 = vector.load %arg14[%c0_37, %c0_38] : memref<8x512xf32, #tpu.memory_space<vmem>>, vector<8x512xf32>
      tpu.vector_store %arg14[%c0_37, %c0_38], %77 {strides = array<i32>} : memref<8x512xf32, #tpu.memory_space<vmem>>, vector<8x512xf32>,
    } else {
    }
    return
  }
  func.func @transform_0(%arg0: i32, %arg1: i32, %arg2: memref<8xi32, #tpu.memory_space<smem>>, %arg3: memref<4xi32, #tpu.memory_space<smem>>) -> (i32, i32, i32) {
    %c2_i32 = arith.constant 2 : i32
    %0 = arith.muli %arg0, %c2_i32 : i32
    %1 = arith.addi %0, %arg1 : i32
    %2 = arith.index_cast %1 : i32 to index
    %3 = memref.load %arg2[%2] : memref<8xi32, #tpu.memory_space<smem>>
    %c0_i32 = arith.constant 0 : i32
    %c0_i32_0 = arith.constant 0 : i32
    %c0_i32_1 = arith.constant 0 : i32
    return %3, %c0_i32, %c0_i32_0 : i32, i32, i32
  }
  func.func @transform_1(%arg0: i32, %arg1: i32, %arg2: memref<8xi32, #tpu.memory_space<smem>>, %arg3: memref<4xi32, #tpu.memory_space<smem>>) -> (i32, i32) {
    %c2_i32 = arith.constant 2 : i32
    %0 = arith.muli %arg0, %c2_i32 : i32
    %1 = arith.addi %0, %arg1 : i32
    %2 = arith.index_cast %1 : i32 to index
    %3 = memref.load %arg2[%2] : memref<8xi32, #tpu.memory_space<smem>>
    %c0_i32 = arith.constant 0 : i32
    %c0_i32_0 = arith.constant 0 : i32
    return %3, %c0_i32 : i32, i32
  }
  func.func @transform_2(%arg0: i32, %arg1: i32, %arg2: memref<8xi32, #tpu.memory_space<smem>>, %arg3: memref<4xi32, #tpu.memory_space<smem>>) -> (i32, i32) {
    %c2_i32 = arith.constant 2 : i32
    %0 = arith.muli %arg0, %c2_i32 : i32
    %1 = arith.addi %0, %arg1 : i32
    %2 = arith.index_cast %1 : i32 to index
    %3 = memref.load %arg2[%2] : memref<8xi32, #tpu.memory_space<smem>>
    %c0_i32 = arith.constant 0 : i32
    %c0_i32_0 = arith.constant 0 : i32
    return %3, %c0_i32 : i32, i32
  }
  func.func @transform_3(%arg0: i32, %arg1: i32, %arg2: memref<8xi32, #tpu.memory_space<smem>>, %arg3: memref<4xi32, #tpu.memory_space<smem>>) -> (i32, i32) {
    %c2_i32 = arith.constant 2 : i32
    %0 = arith.muli %arg0, %c2_i32 : i32
    %1 = arith.addi %0, %arg1 : i32
    %2 = arith.index_cast %1 : i32 to index
    %3 = memref.load %arg2[%2] : memref<8xi32, #tpu.memory_space<smem>>
    %c0_i32 = arith.constant 0 : i32
    %c0_i32_0 = arith.constant 0 : i32
    return %3, %c0_i32 : i32, i32
  }
  func.func @transform_4(%arg0: i32, %arg1: i32, %arg2: memref<8xi32, #tpu.memory_space<smem>>, %arg3: memref<4xi32, #tpu.memory_space<smem>>) -> (i32, i32) {
    %c2_i32 = arith.constant 2 : i32
    %0 = arith.muli %arg0, %c2_i32 : i32
    %1 = arith.addi %0, %arg1 : i32
    %2 = arith.index_cast %1 : i32 to index
    %3 = memref.load %arg2[%2] : memref<8xi32, #tpu.memory_space<smem>>
    %c0_i32 = arith.constant 0 : i32
    %c0_i32_0 = arith.constant 0 : i32
    return %3, %c0_i32 : i32, i32
  }
  func.func @transform_5(%arg0: i32, %arg1: i32, %arg2: memref<8xi32, #tpu.memory_space<smem>>, %arg3: memref<4xi32, #tpu.memory_space<smem>>) -> (i32, i32) {
    %c0_i32 = arith.constant 0 : i32
    %c0_i32_0 = arith.constant 0 : i32
    %c0_i32_1 = arith.constant 0 : i32
    return %c0_i32, %c0_i32_0 : i32, i32
  }
  func.func @transform_6(%arg0: i32, %arg1: i32, %arg2: memref<8xi32, #tpu.memory_space<smem>>, %arg3: memref<4xi32, #tpu.memory_space<smem>>) -> (i32, i32) {
    %c0_i32 = arith.constant 0 : i32
    %c0_i32_0 = arith.constant 0 : i32
    %c0_i32_1 = arith.constant 0 : i32
    return %c0_i32, %c0_i32_0 : i32, i32
  }
  func.func @transform_7(%arg0: i32, %arg1: i32, %arg2: memref<8xi32, #tpu.memory_space<smem>>, %arg3: memref<4xi32, #tpu.memory_space<smem>>) -> (i32, i32) {
    %c0_i32 = arith.constant 0 : i32
    %c0_i32_0 = arith.constant 0 : i32
    %c0_i32_1 = arith.constant 0 : i32
    return %c0_i32, %c0_i32_0 : i32, i32
  }
  func.func @transform_8(%arg0: i32, %arg1: i32, %arg2: memref<8xi32, #tpu.memory_space<smem>>, %arg3: memref<4xi32, #tpu.memory_space<smem>>) -> (i32, i32) {
    %c0_i32 = arith.constant 0 : i32
    %c0_i32_0 = arith.constant 0 : i32
    %c0_i32_1 = arith.constant 0 : i32
    return %c0_i32, %c0_i32_0 : i32, i32
  }
  func.func @transform_9(%arg0: i32, %arg1: i32, %arg2: memref<8xi32, #tpu.memory_space<smem>>, %arg3: memref<4xi32, #tpu.memory_space<smem>>) -> (i32, i32) {
    %c0_i32 = arith.constant 0 : i32
    %c0_i32_0 = arith.constant 0 : i32
    %c0_i32_1 = arith.constant 0 : i32
    return %c0_i32, %c0_i32_0 : i32, i32
  }
  func.func @transform_10(%arg0: i32, %arg1: i32, %arg2: memref<8xi32, #tpu.memory_space<smem>>, %arg3: memref<4xi32, #tpu.memory_space<smem>>) -> (i32, i32) {
    %c0_i32 = arith.constant 0 : i32
    %c0_i32_0 = arith.constant 0 : i32
    return %arg0, %c0_i32 : i32, i32
  }
}

</mosaic_0001>

<llo_original>
// kernel: tpu_custom_call.1
$region0: #{tpu_custom_call.1}
  #allocation0 [shape = 'u32[]', space=smem, size = 0x4, offset = 0x4, fixed_abs, tag = 'smem constant byte address 0x4 - core index']
  #allocation1 [shape = 'u32[144,128]{1,0:T(1,128)}', space=vmem, size = 0x12000, scoped, tag = 'internal scratch']
  #allocation2 [shape = 'bf16[32,512]{1,0:T(16,128)(2,1)}', space=vmem, size = 0x8000, scoped, tag = 'scratch operand']
  #allocation3 [shape = 's32[8,32]{1,0:T(8,128)}', space=vmem, size = 0x1000, scoped, tag = 'scratch operand']
  #allocation4 [shape = 's32[1]{0}', space=sflag, size = 0x4, scoped, tag = 'scoped memory for tpu_custom_call.1']
  #allocation5 [shape = 'u8[512]{0}', space=smem, size = 0x200, scoped, tag = 'prefetched SMEM operand 0']
  #allocation6 [shape = 'u8[512]{0}', space=smem, size = 0x200, scoped, tag = 'prefetched SMEM operand 1']
  %s0 = inlined_call_operand.vmem [shape: s32[8], index: 0, kind: input, shape index: {}]
  %s1 = inlined_call_operand.vmem [shape: s32[4], index: 1, kind: input, shape index: {}]
  %s2 = inlined_call_operand.hbm [shape: s32[4,1,32], index: 2, kind: input, shape index: {}]
  %s3 = inlined_call_operand.hbm [shape: bf16[128,128], index: 3, kind: input, shape index: {}]
  %s4 = inlined_call_operand.vmem [shape: bf16[128,384], index: 4, kind: input, shape index: {}]
  %s5 = inlined_call_operand.vmem [shape: bf16[128,24], index: 5, kind: input, shape index: {}]
  %s6 = inlined_call_operand.vmem [shape: f32[128,4], index: 6, kind: input, shape index: {}]
  %s7 = inlined_call_operand.hbm [shape: bf16[128,128], index: 7, kind: input, shape index: {}]
  %s8 = inlined_call_operand.vmem [shape: f32[1,128], index: 8, kind: input, shape index: {}]
  %s9 = inlined_call_operand.hbm [shape: bf16[128,384], index: 9, kind: input, shape index: {}]
  %s10 = inlined_call_operand.vmem [shape: f32[1,384], index: 10, kind: input, shape index: {}]
  %s11 = inlined_call_operand.vmem [shape: bf16[24,384], index: 11, kind: input, shape index: {}]
  %s12 = inlined_call_operand.hbm [shape: f32[32,512], index: 12, kind: output, shape index: {}]
  %s13 = sld [smem:[#allocation0]]
  $region97: #{tpu_custom_call.1} parent=0
    _
  %s15 = ssub.s32 1, %s13
  %s16 = scalar_select 0, %s15, %s13
  %s17 = sshll.u32 %s0, 4
  %s18 = int_to_ptr.vmem [resolvable:$true] %s17
  %20 = dma.vmem_to_smem %s18, 16, [#allocation5], [#allocation4]
  %s21 = sshll.u32 %s1, 4
  %s22 = int_to_ptr.vmem [resolvable:$true] %s21
  %24 = dma.vmem_to_smem %s22, 16, [#allocation6], [#allocation4]
  %25 = dma.done [#allocation4], 32
  %26 = sfence
  $region1: #{tpu_custom_call.1} parent=0
    #allocation7 [shape = 'u8[1024]{0}', space=vmem, size = 0x400, scoped, tag = 'input window, operand 2']
    #allocation8 [shape = 's32[2]{0}', space=sflag, size = 0x8, scoped, tag = 'scoped memory for tpu_custom_call.1']
    #allocation9 [shape = 's32[2]{0}', space=sflag, size = 0x8, scoped, tag = 'scoped memory for tpu_custom_call.1']
    #allocation10 [shape = 'u8[16384]{0}', space=vmem, size = 0x4000, scoped, tag = 'input window, operand 3']
    #allocation11 [shape = 's32[2]{0}', space=sflag, size = 0x8, scoped, tag = 'scoped memory for tpu_custom_call.1']
    #allocation12 [shape = 'u8[32768]{0}', space=vmem, size = 0x8000, scoped, tag = 'input window, operand 7, single buffered']
    #allocation13 [shape = 'u8[98304]{0}', space=vmem, size = 0x18000, scoped, tag = 'input window, operand 9, single buffered']
    #allocation14 [shape = 's32[1]{0}', space=sflag, size = 0x4, scoped, tag = 'scoped memory for tpu_custom_call.1']
    #allocation15 [shape = 'u8[32768]{0}', space=vmem, size = 0x8000, scoped, tag = 'output window, operand 0']
    %27 = vsyncpa [#allocation8], 0
    %s28 = scalar_lea.sflag [#allocation8], 1
    %29 = vsyncpa %s28, 0
    %30 = vsyncpa [#allocation11], 0
    %s31 = scalar_lea.sflag [#allocation11], 1
    %32 = vsyncpa %s31, 0
    %33 = vsyncpa [#allocation14], 0
    %34 = vsyncpa [#allocation9], 0
    %s35 = scalar_lea.sflag [#allocation9], 1
    %36 = vsyncpa %s35, 0
    loop: start=0, step=1, limit=10
    $region2: #{tpu_custom_call.1} parent=1 // loop_pre_header
      _
    $region3: #{tpu_custom_call.1} parent=1 // loop_header
      %s38 = sphi 0, %s42
      %p39 = scmp.ge.s32.totalorder %s38, 10
      %s45 = sphi 0, %s57
      %s46 = sphi 0, %s53
      %s47 = sphi 0, %s45
      %s48 = sphi 0, %s46
      %s49 = sphi 0, %s47
      %s50 = sphi 0, %s48
      %s66 = sphi 0, %s68
      %s69 = sphi 0, %s66
      %s70 = sphi 0, %s69
      %s86 = sphi 0, %s70
      %s98 = sphi 0, %s100
      %s101 = sphi 0, %s98
      %s102 = sphi 0, %s101
      %s118 = sphi 0, %s102
      %s130 = sphi 0, %s132
      %s133 = sphi 0, %s130
      %s134 = sphi 0, %s133
      %s150 = sphi 0, %s134
      %s162 = sphi 0, %s164
      %s165 = sphi 0, %s162
      %s166 = sphi 0, %s165
      %s182 = sphi 0, %s166
      %s194 = sphi 0, %s196
      %s197 = sphi 0, %s194
      %s198 = sphi 0, %s197
      %s214 = sphi 0, %s198
      %s218 = sphi 0, %s218
      %s220 = sphi 0, %s218
      %s221 = sphi 0, %s220
      %s235 = sphi 0, %s221
      %s239 = sphi 0, %s239
      %s241 = sphi 0, %s239
      %s242 = sphi 0, %s241
      %s256 = sphi 0, %s242
      %s260 = sphi 0, %s260
      %s262 = sphi 0, %s260
      %s263 = sphi 0, %s262
      %s277 = sphi 0, %s263
      %s281 = sphi 0, %s281
      %s283 = sphi 0, %s281
      %s284 = sphi 0, %s283
      %s298 = sphi 0, %s284
      %s302 = sphi 0, %s302
      %s304 = sphi 0, %s302
      %s305 = sphi 0, %s304
      %s319 = sphi 0, %s305
      %s325 = sphi 0, %s327
      %s328 = sphi 0, %s325
      %s329 = sphi 0, %s328
      %s345 = sphi 0, %s329
    $region4: #{tpu_custom_call.1} parent=1 // loop_header_branch
      %41 = sbr.rel (%p39) target = $region8
    $region5: #{tpu_custom_call.1} parent=1 // loop_body
      %s43 = ssub.s32 %s38, 1
      %s44 = ssub.s32 %s38, 2
      %s51 = sadd.s32 1, %s46
      %p52 = scmp.ge.s32.totalorder %s51, 2
      %s53 = scalar_select %p52, 0, %s51
      %s54 = sadd.s32 1, %s45
      %s55 = scalar_select %p52, %s54, %s45
      %p56 = scmp.ge.s32.totalorder %s55, 4
      %s57 = scalar_select %p56, 0, %s55
      %s58 = smul.u32 %s45, 2
      %s59 = sadd.s32 %s58, %s46
      %s60 = sld [smem:[#allocation5 + %s59]]
      %s61 = smul.u32 %s57, 2
      %s62 = sadd.s32 %s61, %s53
      %s63 = sld [smem:[#allocation5 + %s62]]
      %s64 = ssub.s32 %s60, %s63
      %p65 = scmp.eq.s32.totalorder %s64, 0
      %s67 = sadd.s32 %s66, 1
      %s68 = scalar_select %p65, %s66, %s67
      %p71 = pneg %p65
      %p72 = scmp.eq.s32.totalorder %s38, 7
      %p73 = por %p71, %p72
      %p74 = scmp.ne.s32.totalorder %s66, %s69
      %p75 = scmp.eq.s32.totalorder %s38, 0
      %p76 = por %p74, %p75
      %p77 = scmp.ne.s32.totalorder %s66, %s69
      %p78 = scmp.eq.s32.totalorder %s43, 7
      %p79 = por %p77, %p78
      %p80 = scmp.ne.s32.totalorder %s69, %s70
      %p81 = scmp.eq.s32.totalorder %s43, 0
      %p82 = por %p80, %p81
      %p83 = scmp.ne.s32.totalorder %s69, %s70
      %p84 = scmp.eq.s32.totalorder %s44, 7
      %p85 = por %p83, %p84
      %p87 = scmp.ne.s32.totalorder %s70, %s86
      %p88 = scmp.eq.s32.totalorder %s44, 0
      %p89 = por %p87, %p88
      %s90 = smul.u32 %s45, 2
      %s91 = sadd.s32 %s90, %s46
      %s92 = sld [smem:[#allocation5 + %s91]]
      %s93 = smul.u32 %s57, 2
      %s94 = sadd.s32 %s93, %s53
      %s95 = sld [smem:[#allocation5 + %s94]]
      %s96 = ssub.s32 %s92, %s95
      %p97 = scmp.eq.s32.totalorder %s96, 0
      %s99 = sadd.s32 %s98, 1
      %s100 = scalar_select %p97, %s98, %s99
      %p103 = pneg %p97
      %p104 = scmp.eq.s32.totalorder %s38, 7
      %p105 = por %p103, %p104
      %p106 = scmp.ne.s32.totalorder %s98, %s101
      %p107 = scmp.eq.s32.totalorder %s38, 0
      %p108 = por %p106, %p107
      %p109 = scmp.ne.s32.totalorder %s98, %s101
      %p110 = scmp.eq.s32.totalorder %s43, 7
      %p111 = por %p109, %p110
      %p112 = scmp.ne.s32.totalorder %s101, %s102
      %p113 = scmp.eq.s32.totalorder %s43, 0
      %p114 = por %p112, %p113
      %p115 = scmp.ne.s32.totalorder %s101, %s102
      %p116 = scmp.eq.s32.totalorder %s44, 7
      %p117 = por %p115, %p116
      %p119 = scmp.ne.s32.totalorder %s102, %s118
      %p120 = scmp.eq.s32.totalorder %s44, 0
      %p121 = por %p119, %p120
      %s122 = smul.u32 %s45, 2
      %s123 = sadd.s32 %s122, %s46
      %s124 = sld [smem:[#allocation5 + %s123]]
      %s125 = smul.u32 %s57, 2
      %s126 = sadd.s32 %s125, %s53
      %s127 = sld [smem:[#allocation5 + %s126]]
      %s128 = ssub.s32 %s124, %s127
      %p129 = scmp.eq.s32.totalorder %s128, 0
      %s131 = sadd.s32 %s130, 1
      %s132 = scalar_select %p129, %s130, %s131
      %p135 = pneg %p129
      %p136 = scmp.eq.s32.totalorder %s38, 7
      %p137 = por %p135, %p136
      %p138 = scmp.ne.s32.totalorder %s130, %s133
      %p139 = scmp.eq.s32.totalorder %s38, 0
      %p140 = por %p138, %p139
      %p141 = scmp.ne.s32.totalorder %s130, %s133
      %p142 = scmp.eq.s32.totalorder %s43, 7
      %p143 = por %p141, %p142
      %p144 = scmp.ne.s32.totalorder %s133, %s134
      %p145 = scmp.eq.s32.totalorder %s43, 0
      %p146 = por %p144, %p145
      %p147 = scmp.ne.s32.totalorder %s133, %s134
      %p148 = scmp.eq.s32.totalorder %s44, 7
      %p149 = por %p147, %p148
      %p151 = scmp.ne.s32.totalorder %s134, %s150
      %p152 = scmp.eq.s32.totalorder %s44, 0
      %p153 = por %p151, %p152
      %s154 = smul.u32 %s45, 2
      %s155 = sadd.s32 %s154, %s46
      %s156 = sld [smem:[#allocation5 + %s155]]
      %s157 = smul.u32 %s57, 2
      %s158 = sadd.s32 %s157, %s53
      %s159 = sld [smem:[#allocation5 + %s158]]
      %s160 = ssub.s32 %s156, %s159
      %p161 = scmp.eq.s32.totalorder %s160, 0
      %s163 = sadd.s32 %s162, 1
      %s164 = scalar_select %p161, %s162, %s163
      %p167 = pneg %p161
      %p168 = scmp.eq.s32.totalorder %s38, 7
      %p169 = por %p167, %p168
      %p170 = scmp.ne.s32.totalorder %s162, %s165
      %p171 = scmp.eq.s32.totalorder %s38, 0
      %p172 = por %p170, %p171
      %p173 = scmp.ne.s32.totalorder %s162, %s165
      %p174 = scmp.eq.s32.totalorder %s43, 7
      %p175 = por %p173, %p174
      %p176 = scmp.ne.s32.totalorder %s165, %s166
      %p177 = scmp.eq.s32.totalorder %s43, 0
      %p178 = por %p176, %p177
      %p179 = scmp.ne.s32.totalorder %s165, %s166
      %p180 = scmp.eq.s32.totalorder %s44, 7
      %p181 = por %p179, %p180
      %p183 = scmp.ne.s32.totalorder %s166, %s182
      %p184 = scmp.eq.s32.totalorder %s44, 0
      %p185 = por %p183, %p184
      %s186 = smul.u32 %s45, 2
      %s187 = sadd.s32 %s186, %s46
      %s188 = sld [smem:[#allocation5 + %s187]]
      %s189 = smul.u32 %s57, 2
      %s190 = sadd.s32 %s189, %s53
      %s191 = sld [smem:[#allocation5 + %s190]]
      %s192 = ssub.s32 %s188, %s191
      %p193 = scmp.eq.s32.totalorder %s192, 0
      %s195 = sadd.s32 %s194, 1
      %s196 = scalar_select %p193, %s194, %s195
      %p199 = pneg %p193
      %p200 = scmp.eq.s32.totalorder %s38, 7
      %p201 = por %p199, %p200
      %p202 = scmp.ne.s32.totalorder %s194, %s197
      %p203 = scmp.eq.s32.totalorder %s38, 0
      %p204 = por %p202, %p203
      %p205 = scmp.ne.s32.totalorder %s194, %s197
      %p206 = scmp.eq.s32.totalorder %s43, 7
      %p207 = por %p205, %p206
      %p208 = scmp.ne.s32.totalorder %s197, %s198
      %p209 = scmp.eq.s32.totalorder %s43, 0
      %p210 = por %p208, %p209
      %p211 = scmp.ne.s32.totalorder %s197, %s198
      %p212 = scmp.eq.s32.totalorder %s44, 7
      %p213 = por %p211, %p212
      %p215 = scmp.ne.s32.totalorder %s198, %s214
      %p216 = scmp.eq.s32.totalorder %s44, 0
      %p217 = por %p215, %p216
      %s219 = sadd.s32 %s218, 1
      %p222 = scmp.eq.s32.totalorder %s38, 7
      %p223 = scmp.ne.s32.totalorder %s218, %s220
      %p224 = scmp.eq.s32.totalorder %s38, 0
      %p225 = por %p223, %p224
      %p226 = scmp.ne.s32.totalorder %s218, %s220
      %p227 = scmp.eq.s32.totalorder %s43, 7
      %p228 = por %p226, %p227
      %p229 = scmp.ne.s32.totalorder %s220, %s221
      %p230 = scmp.eq.s32.totalorder %s43, 0
      %p231 = por %p229, %p230
      %p232 = scmp.ne.s32.totalorder %s220, %s221
      %p233 = scmp.eq.s32.totalorder %s44, 7
      %p234 = por %p232, %p233
      %p236 = scmp.ne.s32.totalorder %s221, %s235
      %p237 = scmp.eq.s32.totalorder %s44, 0
      %p238 = por %p236, %p237
      %s240 = sadd.s32 %s239, 1
      %p243 = scmp.eq.s32.totalorder %s38, 7
      %p244 = scmp.ne.s32.totalorder %s239, %s241
      %p245 = scmp.eq.s32.totalorder %s38, 0
      %p246 = por %p244, %p245
      %p247 = scmp.ne.s32.totalorder %s239, %s241
      %p248 = scmp.eq.s32.totalorder %s43, 7
      %p249 = por %p247, %p248
      %p250 = scmp.ne.s32.totalorder %s241, %s242
      %p251 = scmp.eq.s32.totalorder %s43, 0
      %p252 = por %p250, %p251
      %p253 = scmp.ne.s32.totalorder %s241, %s242
      %p254 = scmp.eq.s32.totalorder %s44, 7
      %p255 = por %p253, %p254
      %p257 = scmp.ne.s32.totalorder %s242, %s256
      %p258 = scmp.eq.s32.totalorder %s44, 0
      %p259 = por %p257, %p258
      %s261 = sadd.s32 %s260, 1
      %p264 = scmp.eq.s32.totalorder %s38, 7
      %p265 = scmp.ne.s32.totalorder %s260, %s262
      %p266 = scmp.eq.s32.totalorder %s38, 0
      %p267 = por %p265, %p266
      %p268 = scmp.ne.s32.totalorder %s260, %s262
      %p269 = scmp.eq.s32.totalorder %s43, 7
      %p270 = por %p268, %p269
      %p271 = scmp.ne.s32.totalorder %s262, %s263
      %p272 = scmp.eq.s32.totalorder %s43, 0
      %p273 = por %p271, %p272
      %p274 = scmp.ne.s32.totalorder %s262, %s263
      %p275 = scmp.eq.s32.totalorder %s44, 7
      %p276 = por %p274, %p275
      %p278 = scmp.ne.s32.totalorder %s263, %s277
      %p279 = scmp.eq.s32.totalorder %s44, 0
      %p280 = por %p278, %p279
      %s282 = sadd.s32 %s281, 1
      %p285 = scmp.eq.s32.totalorder %s38, 7
      %p286 = scmp.ne.s32.totalorder %s281, %s283
      %p287 = scmp.eq.s32.totalorder %s38, 0
      %p288 = por %p286, %p287
      %p289 = scmp.ne.s32.totalorder %s281, %s283
      %p290 = scmp.eq.s32.totalorder %s43, 7
      %p291 = por %p289, %p290
      %p292 = scmp.ne.s32.totalorder %s283, %s284
      %p293 = scmp.eq.s32.totalorder %s43, 0
      %p294 = por %p292, %p293
      %p295 = scmp.ne.s32.totalorder %s283, %s284
      %p296 = scmp.eq.s32.totalorder %s44, 7
      %p297 = por %p295, %p296
      %p299 = scmp.ne.s32.totalorder %s284, %s298
      %p300 = scmp.eq.s32.totalorder %s44, 0
      %p301 = por %p299, %p300
      %s303 = sadd.s32 %s302, 1
      %p306 = scmp.eq.s32.totalorder %s38, 7
      %p307 = scmp.ne.s32.totalorder %s302, %s304
      %p308 = scmp.eq.s32.totalorder %s38, 0
      %p309 = por %p307, %p308
      %p310 = scmp.ne.s32.totalorder %s302, %s304
      %p311 = scmp.eq.s32.totalorder %s43, 7
      %p312 = por %p310, %p311
      %p313 = scmp.ne.s32.totalorder %s304, %s305
      %p314 = scmp.eq.s32.totalorder %s43, 0
      %p315 = por %p313, %p314
      %p316 = scmp.ne.s32.totalorder %s304, %s305
      %p317 = scmp.eq.s32.totalorder %s44, 7
      %p318 = por %p316, %p317
      %p320 = scmp.ne.s32.totalorder %s305, %s319
      %p321 = scmp.eq.s32.totalorder %s44, 0
      %p322 = por %p320, %p321
      %s323 = ssub.s32 %s45, %s57
      %p324 = scmp.eq.s32.totalorder %s323, 0
      %s326 = sadd.s32 %s325, 1
      %s327 = scalar_select %p324, %s325, %s326
      %p330 = pneg %p324
      %p331 = scmp.eq.s32.totalorder %s38, 7
      %p332 = por %p330, %p331
      %p333 = scmp.ne.s32.totalorder %s325, %s328
      %p334 = scmp.eq.s32.totalorder %s38, 0
      %p335 = por %p333, %p334
      %p336 = scmp.ne.s32.totalorder %s325, %s328
      %p337 = scmp.eq.s32.totalorder %s43, 7
      %p338 = por %p336, %p337
      %p339 = scmp.ne.s32.totalorder %s328, %s329
      %p340 = scmp.eq.s32.totalorder %s43, 0
      %p341 = por %p339, %p340
      %p342 = scmp.ne.s32.totalorder %s328, %s329
      %p343 = scmp.eq.s32.totalorder %s44, 7
      %p344 = por %p342, %p343
      %p346 = scmp.ne.s32.totalorder %s329, %s345
      %p347 = scmp.eq.s32.totalorder %s44, 0
      %p348 = por %p346, %p347
      %p349 = scmp.le.s32.totalorder 1, %s38
      %p350 = scmp.lt.s32.totalorder %s38, 9
      %p351 = pnand %p349, %p350
      %p352 = pneg %p351
      // Predicated region
      $region9: #{tpu_custom_call.1} parent=5 // pred_check
        _
      $region10: #{tpu_custom_call.1} parent=5 // pred_check_branch
        %354 = sbr.rel (%p351) target = $region12
      $region11: #{tpu_custom_call.1} parent=5 // pred_region
        %s355 = ssub.s32 %s38, 1
        // Predicated region
        $region13: #{tpu_custom_call.1} parent=11 // pred_check
          %p356 = pneg %p231
        $region14: #{tpu_custom_call.1} parent=11 // pred_check_branch
          %358 = sbr.rel (%p356) target = $region16
        $region15: #{tpu_custom_call.1} parent=11 // pred_region
          %s360 = ssub.s32 1024, 1024
          %361 = vsyncadd [#allocation11], %s360
          %s362 = sshll.u32 [#allocation12], 4
          %s363 = int_to_ptr.vmem [resolvable:$true] %s362
          %368 = dma.hbm_to_vmem [thread:$0]  %s7, 1024, %s363, [#allocation11], 64, 64, 4
        $region16: #{tpu_custom_call.1} parent=11 // pred_fallthru
          _
        // Predicated region
        $region17: #{tpu_custom_call.1} parent=11 // pred_check
          %p369 = pneg %p252
        $region18: #{tpu_custom_call.1} parent=11 // pred_check_branch
          %371 = sbr.rel (%p369) target = $region20
        $region19: #{tpu_custom_call.1} parent=11 // pred_region
          _
        $region20: #{tpu_custom_call.1} parent=11 // pred_fallthru
          _
        // Predicated region
        $region21: #{tpu_custom_call.1} parent=11 // pred_check
          %p372 = pneg %p273
        $region22: #{tpu_custom_call.1} parent=11 // pred_check_branch
          %374 = sbr.rel (%p372) target = $region24
        $region23: #{tpu_custom_call.1} parent=11 // pred_region
          %s376 = ssub.s32 3072, 3072
          %377 = vsyncadd [#allocation14], %s376
          %s378 = sshll.u32 [#allocation13], 4
          %s379 = int_to_ptr.vmem [resolvable:$true] %s378
          %384 = dma.hbm_to_vmem [thread:$0]  %s9, 3072, %s379, [#allocation14], 192, 192, 12
        $region24: #{tpu_custom_call.1} parent=11 // pred_fallthru
          _
        // Predicated region
        $region25: #{tpu_custom_call.1} parent=11 // pred_check
          %p385 = pneg %p294
        $region26: #{tpu_custom_call.1} parent=11 // pred_check_branch
          %387 = sbr.rel (%p385) target = $region28
        $region27: #{tpu_custom_call.1} parent=11 // pred_region
          _
        $region28: #{tpu_custom_call.1} parent=11 // pred_fallthru
          _
        // Predicated region
        $region29: #{tpu_custom_call.1} parent=11 // pred_check
          %p388 = pneg %p315
        $region30: #{tpu_custom_call.1} parent=11 // pred_check_branch
          %390 = sbr.rel (%p388) target = $region32
        $region31: #{tpu_custom_call.1} parent=11 // pred_region
          _
        $region32: #{tpu_custom_call.1} parent=11 // pred_fallthru
          _
      $region12: #{tpu_custom_call.1} parent=5 // pred_fallthru
        _
      %p391 = scmp.lt.s32.totalorder %s38, 8
      // Predicated region
      $region33: #{tpu_custom_call.1} parent=5 // pred_check
        %p392 = pneg %p391
      $region34: #{tpu_custom_call.1} parent=5 // pred_check_branch
        %394 = sbr.rel (%p392) target = $region36
      $region35: #{tpu_custom_call.1} parent=5 // pred_region
        // Predicated region
        $region37: #{tpu_custom_call.1} parent=35 // pred_check
          %p395 = pneg %p76
        $region38: #{tpu_custom_call.1} parent=35 // pred_check_branch
          %397 = sbr.rel (%p395) target = $region40
        $region39: #{tpu_custom_call.1} parent=35 // pred_region
          %s398 = sand.u32 %s66, 1
          %s399 = scalar_lea.sflag [#allocation8], %s398
          %s400 = sand.u32 %s66, 1
          %s401 = scalar_lea.vmem [#allocation7], %s400
          %s402 = smul.u32 %s45, 2
          %s403 = sadd.s32 %s402, %s46
          %s404 = sld [smem:[#allocation5 + %s403]]
          %s406 = ssub.s32 16, 16
          %407 = vsyncadd %s399, %s406
          %s408 = smul.addr %s404, 16
          %s409 = scalar_lea.hbm %s2, %s408
          %s411 = sshll.u32 %s401, 4
          %s412 = int_to_ptr.vmem [resolvable:$true] %s411
          %414 = dma.hbm_to_vmem [thread:$0]  %s409, 16, %s412, %s399
        $region40: #{tpu_custom_call.1} parent=35 // pred_fallthru
          _
        // Predicated region
        $region41: #{tpu_custom_call.1} parent=35 // pred_check
          %p415 = pneg %p108
        $region42: #{tpu_custom_call.1} parent=35 // pred_check_branch
          %417 = sbr.rel (%p415) target = $region44
        $region43: #{tpu_custom_call.1} parent=35 // pred_region
          %s418 = sand.u32 %s38, 1
          %s419 = scalar_lea.sflag [#allocation11], %s418
          %s420 = sand.u32 %s98, 1
          %s421 = smul.addr %s420, 16
          %s422 = scalar_lea.vmem [#allocation10], %s421
          %s423 = smul.u32 %s45, 2
          %s424 = sadd.s32 %s423, %s46
          %s425 = sld [smem:[#allocation5 + %s424]]
          %s426 = smul.u32 4, %s425
          %s428 = ssub.s32 256, 256
          %429 = vsyncadd %s419, %s428
          %s430 = smul.addr %s426, 64
          %s431 = scalar_lea.hbm %s3, %s430
          %s432 = sshll.u32 %s422, 4
          %s433 = int_to_ptr.vmem [resolvable:$true] %s432
          %438 = dma.hbm_to_vmem [thread:$0]  %s431, 256, %s433, %s419, 64, 64, 4
        $region44: #{tpu_custom_call.1} parent=35 // pred_fallthru
          _
        // Predicated region
        $region45: #{tpu_custom_call.1} parent=35 // pred_check
          %p439 = pneg %p140
        $region46: #{tpu_custom_call.1} parent=35 // pred_check_branch
          %441 = sbr.rel (%p439) target = $region48
        $region47: #{tpu_custom_call.1} parent=35 // pred_region
          %s442 = smul.u32 %s45, 2
          %s443 = sadd.s32 %s442, %s46
          %s444 = sld [smem:[#allocation5 + %s443]]
          %s445 = smul.u32 4, %s444
          %p446 = scmp.lt.s32.totalorder %s445, 15
          %s447 = scalar_select %p446, %s445, 15
          %s448 = smul.addr %s447, 3
          %s449 = smul.addr %s448, 4
          %s450 = scalar_lea.vmem %s4, %s449
          %s451 = smul.u32 %s45, 2
          %s452 = sadd.s32 %s451, %s46
          %s453 = sld [smem:[#allocation5 + %s452]]
          %s454 = smul.u32 4, %s453
        $region48: #{tpu_custom_call.1} parent=35 // pred_fallthru
          _
        // Predicated region
        $region49: #{tpu_custom_call.1} parent=35 // pred_check
          %p455 = pneg %p172
        $region50: #{tpu_custom_call.1} parent=35 // pred_check_branch
          %457 = sbr.rel (%p455) target = $region52
        $region51: #{tpu_custom_call.1} parent=35 // pred_region
          %s458 = smul.u32 %s45, 2
          %s459 = sadd.s32 %s458, %s46
          %s460 = sld [smem:[#allocation5 + %s459]]
          %s461 = smul.u32 4, %s460
          %p462 = scmp.lt.s32.totalorder %s461, 15
          %s463 = scalar_select %p462, %s461, 15
          %s464 = smul.addr %s463, 4
          %s465 = scalar_lea.vmem %s5, %s464
          %s466 = smul.u32 %s45, 2
          %s467 = sadd.s32 %s466, %s46
          %s468 = sld [smem:[#allocation5 + %s467]]
          %s469 = smul.u32 4, %s468
        $region52: #{tpu_custom_call.1} parent=35 // pred_fallthru
          _
        // Predicated region
        $region53: #{tpu_custom_call.1} parent=35 // pred_check
          %p470 = pneg %p204
        $region54: #{tpu_custom_call.1} parent=35 // pred_check_branch
          %472 = sbr.rel (%p470) target = $region56
        $region55: #{tpu_custom_call.1} parent=35 // pred_region
          %s473 = smul.u32 %s45, 2
          %s474 = sadd.s32 %s473, %s46
          %s475 = sld [smem:[#allocation5 + %s474]]
          %s476 = smul.u32 4, %s475
          %p477 = scmp.lt.s32.totalorder %s476, 15
          %s478 = scalar_select %p477, %s476, 15
          %s479 = smul.addr %s478, 8
          %s480 = scalar_lea.vmem %s6, %s479
          %s481 = smul.u32 %s45, 2
          %s482 = sadd.s32 %s481, %s46
          %s483 = sld [smem:[#allocation5 + %s482]]
          %s484 = smul.u32 4, %s483
        $region56: #{tpu_custom_call.1} parent=35 // pred_fallthru
          _
      $region36: #{tpu_custom_call.1} parent=5 // pred_fallthru
        _
      %p485 = scmp.le.s32.totalorder 1, %s38
      %p486 = scmp.lt.s32.totalorder %s38, 9
      %p487 = pnand %p485, %p486
      %p488 = pneg %p487
      // Predicated region
      $region57: #{tpu_custom_call.1} parent=5 // pred_check
        _
      $region58: #{tpu_custom_call.1} parent=5 // pred_check_branch
        %490 = sbr.rel (%p487) target = $region60
      $region59: #{tpu_custom_call.1} parent=5 // pred_region
        %s491 = ssub.s32 %s38, 1
        %s492 = sand.u32 %s69, 1
        %s493 = scalar_lea.sflag [#allocation8], %s492
        %s494 = sand.u32 %s69, 1
        %s495 = scalar_lea.vmem [#allocation7], %s494
        // Predicated region
        $region61: #{tpu_custom_call.1} parent=59 // pred_check
          %p496 = pneg %p82
        $region62: #{tpu_custom_call.1} parent=59 // pred_check_branch
          %498 = sbr.rel (%p496) target = $region64
        $region63: #{tpu_custom_call.1} parent=59 // pred_region
          %499 = dma.done %s493, 16
        $region64: #{tpu_custom_call.1} parent=59 // pred_fallthru
          _
        %s500 = sand.u32 %s43, 1
        %s501 = scalar_lea.sflag [#allocation11], %s500
        %s502 = sand.u32 %s101, 1
        %s503 = smul.addr %s502, 16
        %s504 = scalar_lea.vmem [#allocation10], %s503
        // Predicated region
        $region65: #{tpu_custom_call.1} parent=59 // pred_check
          %p505 = pneg %p114
        $region66: #{tpu_custom_call.1} parent=59 // pred_check_branch
          %507 = sbr.rel (%p505) target = $region68
        $region67: #{tpu_custom_call.1} parent=59 // pred_region
          %508 = dma.done %s501, 256
        $region68: #{tpu_custom_call.1} parent=59 // pred_fallthru
          _
        // Predicated region
        $region69: #{tpu_custom_call.1} parent=59 // pred_check
          %p509 = pneg %p231
        $region70: #{tpu_custom_call.1} parent=59 // pred_check_branch
          %511 = sbr.rel (%p509) target = $region72
        $region71: #{tpu_custom_call.1} parent=59 // pred_region
          %512 = dma.done [#allocation11], 1024
        $region72: #{tpu_custom_call.1} parent=59 // pred_fallthru
          _
        // Predicated region
        $region73: #{tpu_custom_call.1} parent=59 // pred_check
          %p513 = pneg %p273
        $region74: #{tpu_custom_call.1} parent=59 // pred_check_branch
          %515 = sbr.rel (%p513) target = $region76
        $region75: #{tpu_custom_call.1} parent=59 // pred_region
          %516 = dma.done [#allocation14], 3072
        $region76: #{tpu_custom_call.1} parent=59 // pred_fallthru
          _
        %s517 = sand.u32 %s69, 1
        %s518 = scalar_lea.sflag [#allocation8], %s517
        %s519 = sand.u32 %s69, 1
        %s520 = scalar_lea.vmem [#allocation7], %s519
        %p521 = pneg %p82
        %p522 = pneg %p79
        %s523 = sand.u32 %s43, 1
        %s524 = scalar_lea.sflag [#allocation11], %s523
        %s525 = sand.u32 %s101, 1
        %s526 = smul.addr %s525, 16
        %s527 = scalar_lea.vmem [#allocation10], %s526
        %p528 = pneg %p114
        %p529 = pneg %p111
        %s530 = smul.u32 %s47, 2
        %s531 = sadd.s32 %s530, %s48
        %s532 = sld [smem:[#allocation5 + %s531]]
        %s533 = smul.u32 4, %s532
        %p534 = scmp.lt.s32.totalorder %s533, 15
        %s535 = scalar_select %p534, %s533, 15
        %s536 = smul.addr %s535, 3
        %s537 = smul.addr %s536, 4
        %s538 = scalar_lea.vmem %s4, %s537
        %p539 = pneg %p146
        %p540 = pneg %p143
        %s541 = smul.u32 %s47, 2
        %s542 = sadd.s32 %s541, %s48
        %s543 = sld [smem:[#allocation5 + %s542]]
        %s544 = smul.u32 4, %s543
        %p545 = scmp.lt.s32.totalorder %s544, 15
        %s546 = scalar_select %p545, %s544, 15
        %s547 = smul.addr %s546, 4
        %s548 = scalar_lea.vmem %s5, %s547
        %p549 = pneg %p178
        %p550 = pneg %p175
        %s551 = smul.u32 %s47, 2
        %s552 = sadd.s32 %s551, %s48
        %s553 = sld [smem:[#allocation5 + %s552]]
        %s554 = smul.u32 4, %s553
        %p555 = scmp.lt.s32.totalorder %s554, 15
        %s556 = scalar_select %p555, %s554, 15
        %s557 = smul.addr %s556, 8
        %s558 = scalar_lea.vmem %s6, %s557
        %p559 = pneg %p210
        %p560 = pneg %p207
        %p561 = pneg %p231
        %p562 = pneg %p228
        %p563 = pneg %p252
        %p564 = pneg %p249
        %p565 = pneg %p273
        %p566 = pneg %p270
        %p567 = pneg %p294
        %p568 = pneg %p291
        %p569 = pneg %p315
        %p570 = pneg %p312
        %p571 = pneg %p341
        %p572 = pneg %p338
        %s573 = sand.u32 %s328, 1
        %s574 = scalar_lea.sflag [#allocation9], %s573
        %s575 = sand.u32 %s328, 1
        %s576 = smul.addr %s575, 32
        %s577 = scalar_lea.vmem [#allocation15], %s576
        %s578 = smul.u32 %s47, 2
        %s579 = sadd.s32 %s578, %s48
        %s580 = sld [smem:[#allocation5 + %s579]]
        %s581 = smul.u32 %s47, 2
        %s582 = sadd.s32 %s581, %s48
        %s583 = sld [smem:[#allocation5 + %s582]]
        %s584 = smul.u32 4, %s583
        %s585 = smul.u32 %s47, 2
        %s586 = sadd.s32 %s585, %s48
        %s587 = sld [smem:[#allocation5 + %s586]]
        %s588 = smul.u32 4, %s587
        %p589 = scmp.lt.s32.totalorder %s588, 15
        %s590 = scalar_select %p589, %s588, 15
        %s591 = smul.addr %s590, 3
        %s592 = smul.addr %s591, 4
        %s593 = scalar_lea.vmem %s4, %s592
        %s594 = smul.u32 %s47, 2
        %s595 = sadd.s32 %s594, %s48
        %s596 = sld [smem:[#allocation5 + %s595]]
        %s597 = smul.u32 4, %s596
        %s598 = smul.u32 %s47, 2
        %s599 = sadd.s32 %s598, %s48
        %s600 = sld [smem:[#allocation5 + %s599]]
        %s601 = smul.u32 4, %s600
        %p602 = scmp.lt.s32.totalorder %s601, 15
        %s603 = scalar_select %p602, %s601, 15
        %s604 = smul.addr %s603, 4
        %s605 = scalar_lea.vmem %s5, %s604
        %s606 = smul.u32 %s47, 2
        %s607 = sadd.s32 %s606, %s48
        %s608 = sld [smem:[#allocation5 + %s607]]
        %s609 = smul.u32 4, %s608
        %s610 = smul.u32 %s47, 2
        %s611 = sadd.s32 %s610, %s48
        %s612 = sld [smem:[#allocation5 + %s611]]
        %s613 = smul.u32 4, %s612
        %p614 = scmp.lt.s32.totalorder %s613, 15
        %s615 = scalar_select %p614, %s613, 15
        %s616 = smul.addr %s615, 8
        %s617 = scalar_lea.vmem %s6, %s616
        %s618 = smul.u32 %s47, 2
        %s619 = sadd.s32 %s618, %s48
        %s620 = sld [smem:[#allocation5 + %s619]]
        %s621 = smul.u32 4, %s620
        %p623 = scmp.eq.s32.totalorder %s48, 0
        // Predicated region
        $region77: #{tpu_custom_call.1} parent=59 // pred_check
          %p624 = pneg %p623
        $region78: #{tpu_custom_call.1} parent=59 // pred_check_branch
          %626 = sbr.rel (%p624) target = $region80
        $region79: #{tpu_custom_call.1} parent=59 // pred_region
          %627 = vst [vmem:[%s577] sm:$0xff] 0.0
          %628 = vst [vmem:[%s577 + $0x8] sm:$0xff] 0.0
          %629 = vst [vmem:[%s577 + $0x10] sm:$0xff] 0.0
          %630 = vst [vmem:[%s577 + $0x18] sm:$0xff] 0.0
          %v631 = vlaneseq
          %v632 = vshrl.u32 %v631, 7
          %vm633 = vcmask 261120
          %634 = vst.msk [vmem:[#allocation3] sm:$0xff] %vm633, %v632
        $region80: #{tpu_custom_call.1} parent=59 // pred_fallthru
          _
        %s635 = sld [smem:[#allocation6 + %s47]]
        %p636 = scmp.lt.s32.totalorder %s48, %s635
        // Predicated region
        $region81: #{tpu_custom_call.1} parent=59 // pred_check
          %p637 = pneg %p636
        $region82: #{tpu_custom_call.1} parent=59 // pred_check_branch
          %639 = sbr.rel (%p637) target = $region84
        $region83: #{tpu_custom_call.1} parent=59 // pred_region
          %v640 = vld [vmem:[%s504] sm:$0xf]
          %v641 = vld [vmem:[%s504 + $0x4] sm:$0xf]
          %v642 = vld [vmem:[%s504 + $0x8] sm:$0xf]
          %v643 = vld [vmem:[%s504 + $0xc] sm:$0xf]
          %v644 = vld [vmem:[#allocation12] sm:$0xf]
          %v645 = vld [vmem:[#allocation12 + $0x4] sm:$0xf]
          %v646 = vld [vmem:[#allocation12 + $0x8] sm:$0xf]
          %v647 = vld [vmem:[#allocation12 + $0xc] sm:$0xf]
          %v648 = vld [vmem:[#allocation12 + $0x10] sm:$0xf]
          %v649 = vld [vmem:[#allocation12 + $0x14] sm:$0xf]
          %v650 = vld [vmem:[#allocation12 + $0x18] sm:$0xf]
          %v651 = vld [vmem:[#allocation12 + $0x1c] sm:$0xf]
          %v652 = vld [vmem:[#allocation12 + $0x20] sm:$0xf]
          %v653 = vld [vmem:[#allocation12 + $0x24] sm:$0xf]
          %v654 = vld [vmem:[#allocation12 + $0x28] sm:$0xf]
          %v655 = vld [vmem:[#allocation12 + $0x2c] sm:$0xf]
          %v656 = vld [vmem:[#allocation12 + $0x30] sm:$0xf]
          %v657 = vld [vmem:[#allocation12 + $0x34] sm:$0xf]
          %v658 = vld [vmem:[#allocation12 + $0x38] sm:$0xf]
          %v659 = vld [vmem:[#allocation12 + $0x3c] sm:$0xf]
          %v660 = vld [vmem:[%s8] sm:$0x1]
          %v662 = vlaneseq
          %v663 = vshrl.u32 %v662, 7
          %v664 = vsub.s32 0, %v663
          %v665 = vrot.slane %v660, %v664
          %v671 = vunpack.c.l.b16 %v640
          %v672 = vunpack.c.l.b16 %v641
          %v673 = vunpack.c.l.b16 %v642
          %v674 = vunpack.c.l.b16 %v643
          %v675 = vpack.c.b16 %v672, %v671
          %v676 = vpack.c.b16 %v674, %v673
          %v695 = vunpack.c.l.b16 %v644
          %v696 = vunpack.c.l.b16 %v645
          %v697 = vunpack.c.l.b16 %v646
          %v698 = vunpack.c.l.b16 %v647
          %v699 = vunpack.c.l.b16 %v648
          %v700 = vunpack.c.l.b16 %v649
          %v701 = vunpack.c.l.b16 %v650
          %v702 = vunpack.c.l.b16 %v651
          %v703 = vunpack.c.l.b16 %v652
          %v704 = vunpack.c.l.b16 %v653
          %v705 = vunpack.c.l.b16 %v654
          %v706 = vunpack.c.l.b16 %v655
          %v707 = vunpack.c.l.b16 %v656
          %v708 = vunpack.c.l.b16 %v657
          %v709 = vunpack.c.l.b16 %v658
          %v710 = vunpack.c.l.b16 %v659
          %v711 = vpack.c.b16 %v696, %v695
          %v712 = vpack.c.b16 %v698, %v697
          %v713 = vpack.c.b16 %v700, %v699
          %v714 = vpack.c.b16 %v702, %v701
          %v715 = vpack.c.b16 %v704, %v703
          %v716 = vpack.c.b16 %v706, %v705
          %v717 = vpack.c.b16 %v708, %v707
          %v718 = vpack.c.b16 %v710, %v709
          %727 = vmatprep.subr.bf16.mxu0 0
          %728 = vmatpush1.bf16.msra.mxu0 %v711
          %729 = vmatprep.subr.bf16.mxu0 0
          %730 = vmatpush1.bf16.msra.mxu0 %v712
          %731 = vmatprep.subr.bf16.mxu0 0
          %732 = vmatpush1.bf16.msra.mxu0 %v713
          %733 = vmatprep.subr.bf16.mxu0 0
          %734 = vmatpush1.bf16.msra.mxu0 %v714
          %735 = vmatprep.subr.bf16.mxu0 0
          %736 = vmatpush1.bf16.msra.mxu0 %v715
          %737 = vmatprep.subr.bf16.mxu0 0
          %738 = vmatpush1.bf16.msra.mxu0 %v716
          %739 = vmatprep.subr.bf16.mxu0 0
          %740 = vmatpush1.bf16.msra.mxu0 %v717
          %741 = vmatprep.subr.bf16.mxu0 0
          %742 = vmatpush1.bf16.msra.mxu0 %v718
          %743 = vmatprep.subr.bf16.mxu0 0
          %744 = vmatpush1.bf16.msra.mxu0 0
          %745 = vmatprep.subr.bf16.mxu0 0
          %746 = vmatpush1.bf16.msra.mxu0 0
          %747 = vmatprep.subr.bf16.mxu0 0
          %748 = vmatpush1.bf16.msra.mxu0 0
          %749 = vmatprep.subr.bf16.mxu0 0
          %750 = vmatpush1.bf16.msra.mxu0 0
          %751 = vmatprep.subr.bf16.mxu0 0
          %752 = vmatpush1.bf16.msra.mxu0 0
          %753 = vmatprep.subr.bf16.mxu0 0
          %754 = vmatpush1.bf16.msra.mxu0 0
          %755 = vmatprep.subr.bf16.mxu0 0
          %756 = vmatpush1.bf16.msra.mxu0 0
          %757 = vmatprep.subr.bf16.mxu0 0
          %758 = vmatpush1.bf16.msra.mxu0 0
          %759 = vmatprep.mubr.bf16.mxu0 0
          %760 = vmatmul.mubr.bf16.gmra.mrb[0].mxu0 %v675
          %v761 = vpop.f32.mrb[0].mxu0
          %v762 = vadd.f32 %v665, %v761
          %v763 = vpop.f32.mrb[0].mxu0
          %v764 = vpop.f32.mrb[0].mxu0
          %v765 = vadd.f32 %v665, %v764
          %v766 = vpop.f32.mrb[0].mxu0
          %767 = vmatprep.mubr.bf16.mxu0 0
          %768 = vmatmul.mubr.bf16.gmra.mrb[0].mxu0 %v676
          %v769 = vpop.f32.mrb[0].mxu0
          %v770 = vadd.f32 %v665, %v769
          %v771 = vpop.f32.mrb[0].mxu0
          %v772 = vpop.f32.mrb[0].mxu0
          %v773 = vadd.f32 %v665, %v772
          %v774 = vpop.f32.mrb[0].mxu0
          %775 = vdwg.mxu0
          %v776 = vxor.u32 %v762, 2147483648
          %v777 = vxor.u32 %v765, 2147483648
          %v778 = vxor.u32 %v770, 2147483648
          %v779 = vxor.u32 %v773, 2147483648
          %v780 = vmul.f32 %v776, 1.442695
          %v781 = vpow.pop %v780
          %v782 = vmul.f32 %v777, 1.442695
          %v783 = vpow.pop %v782
          %v784 = vmul.f32 %v778, 1.442695
          %v785 = vpow.pop %v784
          %v786 = vmul.f32 %v779, 1.442695
          %v787 = vpow.pop %v786
          %v788 = vadd.f32 %v781, 1.0
          %v789 = vadd.f32 %v783, 1.0
          %v790 = vadd.f32 %v785, 1.0
          %v791 = vadd.f32 %v787, 1.0
          %v792 = vrcp.pop %v788
          %v793 = vmul.f32 1.0, %v792
          %v794 = vrcp.pop %v789
          %v795 = vmul.f32 1.0, %v794
          %v796 = vrcp.pop %v790
          %v797 = vmul.f32 1.0, %v796
          %v798 = vrcp.pop %v791
          %v799 = vmul.f32 1.0, %v798
          %v800 = vmul.f32 %v762, %v793
          %v801 = vmul.f32 %v765, %v795
          %v802 = vmul.f32 %v770, %v797
          %v803 = vmul.f32 %v773, %v799
          %v804 = vpack.c.bf16 %v801, %v800
          %v805 = vpack.c.bf16 %v803, %v802
          %v806 = vld [vmem:[#allocation13] sm:$0xff]
          %v807 = vld [vmem:[#allocation13 + $0x8] sm:$0xf]
          %v808 = vld [vmem:[#allocation13 + $0xc] sm:$0xff]
          %v809 = vld [vmem:[#allocation13 + $0x14] sm:$0xf]
          %v810 = vld [vmem:[#allocation13 + $0x18] sm:$0xff]
          %v811 = vld [vmem:[#allocation13 + $0x20] sm:$0xf]
          %v812 = vld [vmem:[#allocation13 + $0x24] sm:$0xff]
          %v813 = vld [vmem:[#allocation13 + $0x2c] sm:$0xf]
          %v814 = vld [vmem:[#allocation13 + $0x30] sm:$0xff]
          %v815 = vld [vmem:[#allocation13 + $0x38] sm:$0xf]
          %v816 = vld [vmem:[#allocation13 + $0x3c] sm:$0xff]
          %v817 = vld [vmem:[#allocation13 + $0x44] sm:$0xf]
          %v818 = vld [vmem:[#allocation13 + $0x48] sm:$0xff]
          %v819 = vld [vmem:[#allocation13 + $0x50] sm:$0xf]
          %v820 = vld [vmem:[#allocation13 + $0x54] sm:$0xff]
          %v821 = vld [vmem:[#allocation13 + $0x5c] sm:$0xf]
          %v822 = vld [vmem:[#allocation13 + $0x60] sm:$0xff]
          %v823 = vld [vmem:[#allocation13 + $0x68] sm:$0xf]
          %v824 = vld [vmem:[#allocation13 + $0x6c] sm:$0xff]
          %v825 = vld [vmem:[#allocation13 + $0x74] sm:$0xf]
          %v826 = vld [vmem:[#allocation13 + $0x78] sm:$0xff]
          %v827 = vld [vmem:[#allocation13 + $0x80] sm:$0xf]
          %v828 = vld [vmem:[#allocation13 + $0x84] sm:$0xff]
          %v829 = vld [vmem:[#allocation13 + $0x8c] sm:$0xf]
          %v830 = vld [vmem:[#allocation13 + $0x90] sm:$0xff]
          %v831 = vld [vmem:[#allocation13 + $0x98] sm:$0xf]
          %v832 = vld [vmem:[#allocation13 + $0x9c] sm:$0xff]
          %v833 = vld [vmem:[#allocation13 + $0xa4] sm:$0xf]
          %v834 = vld [vmem:[#allocation13 + $0xa8] sm:$0xff]
          %v835 = vld [vmem:[#allocation13 + $0xb0] sm:$0xf]
          %v836 = vld [vmem:[#allocation13 + $0xb4] sm:$0xff]
          %v837 = vld [vmem:[#allocation13 + $0xbc] sm:$0xf]
          %v838 = vld [vmem:[%s10] sm:$0x7]
          %v840 = vlaneseq
          %v841 = vshrl.u32 %v840, 7
          %v842 = vsub.s32 0, %v841
          %v843 = vrot.slane %v838, %v842
          %v844 = vlaneseq
          %v845 = vshrl.u32 %v844, 7
          %v846 = vsub.s32 1, %v845
          %v847 = vrot.slane %v838, %v846
          %v848 = vlaneseq
          %v849 = vshrl.u32 %v848, 7
          %v850 = vsub.s32 2, %v849
          %v851 = vrot.slane %v838, %v850
          %v887 = vunpack.c.l.b16 %v806
          %v888 = vunpack.c.h.b16 %v806
          %v889 = vunpack.c.l.b16 %v807
          %v890 = vunpack.c.l.b16 %v808
          %v891 = vunpack.c.h.b16 %v808
          %v892 = vunpack.c.l.b16 %v809
          %v893 = vunpack.c.l.b16 %v810
          %v894 = vunpack.c.h.b16 %v810
          %v895 = vunpack.c.l.b16 %v811
          %v896 = vunpack.c.l.b16 %v812
          %v897 = vunpack.c.h.b16 %v812
          %v898 = vunpack.c.l.b16 %v813
          %v899 = vunpack.c.l.b16 %v814
          %v900 = vunpack.c.h.b16 %v814
          %v901 = vunpack.c.l.b16 %v815
          %v902 = vunpack.c.l.b16 %v816
          %v903 = vunpack.c.h.b16 %v816
          %v904 = vunpack.c.l.b16 %v817
          %v905 = vunpack.c.l.b16 %v818
          %v906 = vunpack.c.h.b16 %v818
          %v907 = vunpack.c.l.b16 %v819
          %v908 = vunpack.c.l.b16 %v820
          %v909 = vunpack.c.h.b16 %v820
          %v910 = vunpack.c.l.b16 %v821
          %v911 = vunpack.c.l.b16 %v822
          %v912 = vunpack.c.h.b16 %v822
          %v913 = vunpack.c.l.b16 %v823
          %v914 = vunpack.c.l.b16 %v824
          %v915 = vunpack.c.h.b16 %v824
          %v916 = vunpack.c.l.b16 %v825
          %v917 = vunpack.c.l.b16 %v826
          %v918 = vunpack.c.h.b16 %v826
          %v919 = vunpack.c.l.b16 %v827
          %v920 = vunpack.c.l.b16 %v828
          %v921 = vunpack.c.h.b16 %v828
          %v922 = vunpack.c.l.b16 %v829
          %v923 = vunpack.c.l.b16 %v830
          %v924 = vunpack.c.h.b16 %v830
          %v925 = vunpack.c.l.b16 %v831
          %v926 = vunpack.c.l.b16 %v832
          %v927 = vunpack.c.h.b16 %v832
          %v928 = vunpack.c.l.b16 %v833
          %v929 = vunpack.c.l.b16 %v834
          %v930 = vunpack.c.h.b16 %v834
          %v931 = vunpack.c.l.b16 %v835
          %v932 = vunpack.c.l.b16 %v836
          %v933 = vunpack.c.h.b16 %v836
          %v934 = vunpack.c.l.b16 %v837
          %v935 = vpack.c.b16 %v890, %v887
          %v936 = vpack.c.b16 %v891, %v888
          %v937 = vpack.c.b16 %v892, %v889
          %v938 = vpack.c.b16 %v896, %v893
          %v939 = vpack.c.b16 %v897, %v894
          %v940 = vpack.c.b16 %v898, %v895
          %v941 = vpack.c.b16 %v902, %v899
          %v942 = vpack.c.b16 %v903, %v900
          %v943 = vpack.c.b16 %v904, %v901
          %v944 = vpack.c.b16 %v908, %v905
          %v945 = vpack.c.b16 %v909, %v906
          %v946 = vpack.c.b16 %v910, %v907
          %v947 = vpack.c.b16 %v914, %v911
          %v948 = vpack.c.b16 %v915, %v912
          %v949 = vpack.c.b16 %v916, %v913
          %v950 = vpack.c.b16 %v920, %v917
          %v951 = vpack.c.b16 %v921, %v918
          %v952 = vpack.c.b16 %v922, %v919
          %v953 = vpack.c.b16 %v926, %v923
          %v954 = vpack.c.b16 %v927, %v924
          %v955 = vpack.c.b16 %v928, %v925
          %v956 = vpack.c.b16 %v932, %v929
          %v957 = vpack.c.b16 %v933, %v930
          %v958 = vpack.c.b16 %v934, %v931
          %983 = vmatprep.subr.bf16.mxu0 %v936
          %984 = vmatpush1.bf16.msra.mxu0 %v935
          %985 = vmatprep.subr.bf16.mxu0 %v939
          %986 = vmatpush1.bf16.msra.mxu0 %v938
          %987 = vmatprep.subr.bf16.mxu0 %v942
          %988 = vmatpush1.bf16.msra.mxu0 %v941
          %989 = vmatprep.subr.bf16.mxu0 %v945
          %990 = vmatpush1.bf16.msra.mxu0 %v944
          %991 = vmatprep.subr.bf16.mxu0 %v948
          %992 = vmatpush1.bf16.msra.mxu0 %v947
          %993 = vmatprep.subr.bf16.mxu0 %v951
          %994 = vmatpush1.bf16.msra.mxu0 %v950
          %995 = vmatprep.subr.bf16.mxu0 %v954
          %996 = vmatpush1.bf16.msra.mxu0 %v953
          %997 = vmatprep.subr.bf16.mxu0 %v957
          %998 = vmatpush1.bf16.msra.mxu0 %v956
          %999 = vmatprep.subr.bf16.mxu0 0
          %1000 = vmatpush1.bf16.msra.mxu0 0
          %1001 = vmatprep.subr.bf16.mxu0 0
          %1002 = vmatpush1.bf16.msra.mxu0 0
          %1003 = vmatprep.subr.bf16.mxu0 0
          %1004 = vmatpush1.bf16.msra.mxu0 0
          %1005 = vmatprep.subr.bf16.mxu0 0
          %1006 = vmatpush1.bf16.msra.mxu0 0
          %1007 = vmatprep.subr.bf16.mxu0 0
          %1008 = vmatpush1.bf16.msra.mxu0 0
          %1009 = vmatprep.subr.bf16.mxu0 0
          %1010 = vmatpush1.bf16.msra.mxu0 0
          %1011 = vmatprep.subr.bf16.mxu0 0
          %1012 = vmatpush1.bf16.msra.mxu0 0
          %1013 = vmatprep.subr.bf16.mxu0 0
          %1014 = vmatpush1.bf16.msra.mxu0 0
          %1015 = vmatprep.mubr.bf16.mxu0 0
          %1016 = vmatmul.mubr.bf16.gmra.mrb[0].mxu0 %v804
          %v1017 = vpop.f32.mrb[0].mxu0
          %v1018 = vadd.f32 %v843, %v1017
          %v1019 = vpop.f32.mrb[0].mxu0
          %v1020 = vadd.f32 %v847, %v1019
          %v1021 = vpop.f32.mrb[0].mxu0
          %v1022 = vadd.f32 %v843, %v1021
          %v1023 = vpop.f32.mrb[0].mxu0
          %v1024 = vadd.f32 %v847, %v1023
          %1025 = vmatprep.mubr.bf16.mxu0 0
          %1026 = vmatmul.mubr.bf16.gmra.mrb[0].mxu0 %v805
          %v1027 = vpop.f32.mrb[0].mxu0
          %v1028 = vadd.f32 %v843, %v1027
          %v1029 = vpop.f32.mrb[0].mxu0
          %v1030 = vadd.f32 %v847, %v1029
          %v1031 = vpop.f32.mrb[0].mxu0
          %v1032 = vadd.f32 %v843, %v1031
          %v1033 = vpop.f32.mrb[0].mxu0
          %v1034 = vadd.f32 %v847, %v1033
          %1035 = vdwg.mxu0
          %1036 = vmatprep.subr.bf16.mxu0 0
          %1037 = vmatpush1.bf16.msra.mxu0 %v937
          %1038 = vmatprep.subr.bf16.mxu0 0
          %1039 = vmatpush1.bf16.msra.mxu0 %v940
          %1040 = vmatprep.subr.bf16.mxu0 0
          %1041 = vmatpush1.bf16.msra.mxu0 %v943
          %1042 = vmatprep.subr.bf16.mxu0 0
          %1043 = vmatpush1.bf16.msra.mxu0 %v946
          %1044 = vmatprep.subr.bf16.mxu0 0
          %1045 = vmatpush1.bf16.msra.mxu0 %v949
          %1046 = vmatprep.subr.bf16.mxu0 0
          %1047 = vmatpush1.bf16.msra.mxu0 %v952
          %1048 = vmatprep.subr.bf16.mxu0 0
          %1049 = vmatpush1.bf16.msra.mxu0 %v955
          %1050 = vmatprep.subr.bf16.mxu0 0
          %1051 = vmatpush1.bf16.msra.mxu0 %v958
          %1052 = vmatprep.subr.bf16.mxu0 0
          %1053 = vmatpush1.bf16.msra.mxu0 0
          %1054 = vmatprep.subr.bf16.mxu0 0
          %1055 = vmatpush1.bf16.msra.mxu0 0
          %1056 = vmatprep.subr.bf16.mxu0 0
          %1057 = vmatpush1.bf16.msra.mxu0 0
          %1058 = vmatprep.subr.bf16.mxu0 0
          %1059 = vmatpush1.bf16.msra.mxu0 0
          %1060 = vmatprep.subr.bf16.mxu0 0
          %1061 = vmatpush1.bf16.msra.mxu0 0
          %1062 = vmatprep.subr.bf16.mxu0 0
          %1063 = vmatpush1.bf16.msra.mxu0 0
          %1064 = vmatprep.subr.bf16.mxu0 0
          %1065 = vmatpush1.bf16.msra.mxu0 0
          %1066 = vmatprep.subr.bf16.mxu0 0
          %1067 = vmatpush1.bf16.msra.mxu0 0
          %1068 = vmatprep.mubr.bf16.mxu0 0
          %1069 = vmatmul.mubr.bf16.gmra.mrb[0].mxu0 %v804
          %v1070 = vpop.f32.mrb[0].mxu0
          %v1071 = vadd.f32 %v851, %v1070
          %v1072 = vpop.f32.mrb[0].mxu0
          %v1073 = vpop.f32.mrb[0].mxu0
          %v1074 = vadd.f32 %v851, %v1073
          %v1075 = vpop.f32.mrb[0].mxu0
          %1076 = vmatprep.mubr.bf16.mxu0 0
          %1077 = vmatmul.mubr.bf16.gmra.mrb[0].mxu0 %v805
          %v1078 = vpop.f32.mrb[0].mxu0
          %v1079 = vadd.f32 %v851, %v1078
          %v1080 = vpop.f32.mrb[0].mxu0
          %v1081 = vpop.f32.mrb[0].mxu0
          %v1082 = vadd.f32 %v851, %v1081
          %v1083 = vpop.f32.mrb[0].mxu0
          %1084 = vdwg.mxu0
          %v1085 = vld [vmem:[%s605] sm:$0xf]
          %v1086 = vld [vmem:[%s605 + $0x4] sm:$0xf]
          %v1087 = vld [vmem:[%s605 + $0x8] sm:$0xf]
          %v1088 = vld [vmem:[%s605 + $0xc] sm:$0xf]
          %v1089 = vld [vmem:[%s11] sm:$0xff]
          %v1090 = vld [vmem:[%s11 + $0x8] sm:$0xf]
          %v1091 = vld [vmem:[%s11 + $0xc] sm:$0xff]
          %v1092 = vld [vmem:[%s11 + $0x14] sm:$0xf]
          %v1093 = vld [vmem:[%s11 + $0x18] sm:$0xff]
          %v1094 = vld [vmem:[%s11 + $0x20] sm:$0xf]
          %v1099 = vunpack.c.l.b16 %v1085
          %v1100 = vunpack.c.l.b16 %v1086
          %v1101 = vunpack.c.l.b16 %v1087
          %v1102 = vunpack.c.l.b16 %v1088
          %v1103 = vpack.c.b16 %v1100, %v1099
          %v1104 = vpack.c.b16 %v1102, %v1101
          %v1111 = vunpack.c.l.b16 %v1089
          %v1112 = vunpack.c.h.b16 %v1089
          %v1113 = vunpack.c.l.b16 %v1090
          %v1114 = vunpack.c.l.b16 %v1091
          %v1115 = vunpack.c.h.b16 %v1091
          %v1116 = vunpack.c.l.b16 %v1092
          %v1117 = vunpack.c.l.b16 %v1093
          %v1118 = vunpack.c.h.b16 %v1093
          %v1119 = vunpack.c.l.b16 %v1094
          %v1120 = vpack.c.b16 %v1114, %v1111
          %v1121 = vpack.c.b16 %v1115, %v1112
          %v1122 = vpack.c.b16 %v1116, %v1113
          %v1123 = vpack.c.b16 %v1117, %v1117
          %v1124 = vpack.c.b16 %v1118, %v1118
          %v1125 = vpack.c.b16 %v1119, %v1119
          %vm1129 = vcmask 195584
          %v1131 = vsel %vm1129, %v1103, 0
          %v1134 = vsel %vm1129, %v1104, 0
          %vm1136 = vcmask 1043456
          %v1138 = vsel %vm1136, %v1123, 0
          %v1141 = vsel %vm1136, %v1124, 0
          %v1144 = vsel %vm1136, %v1125, 0
          %1146 = vmatprep.subr.bf16.mxu0 %v1121
          %1147 = vmatpush1.bf16.msra.mxu0 %v1120
          %1148 = vmatprep.subr.bf16.mxu0 %v1141
          %1149 = vmatpush1.bf16.msra.mxu0 %v1138
          %1150 = vmatprep.subr.bf16.mxu0 0
          %1151 = vmatpush1.bf16.msra.mxu0 0
          %1152 = vmatprep.subr.bf16.mxu0 0
          %1153 = vmatpush1.bf16.msra.mxu0 0
          %1154 = vmatprep.subr.bf16.mxu0 0
          %1155 = vmatpush1.bf16.msra.mxu0 0
          %1156 = vmatprep.subr.bf16.mxu0 0
          %1157 = vmatpush1.bf16.msra.mxu0 0
          %1158 = vmatprep.subr.bf16.mxu0 0
          %1159 = vmatpush1.bf16.msra.mxu0 0
          %1160 = vmatprep.subr.bf16.mxu0 0
          %1161 = vmatpush1.bf16.msra.mxu0 0
          %1162 = vmatprep.subr.bf16.mxu0 0
          %1163 = vmatpush1.bf16.msra.mxu0 0
          %1164 = vmatprep.subr.bf16.mxu0 0
          %1165 = vmatpush1.bf16.msra.mxu0 0
          %1166 = vmatprep.subr.bf16.mxu0 0
          %1167 = vmatpush1.bf16.msra.mxu0 0
          %1168 = vmatprep.subr.bf16.mxu0 0
          %1169 = vmatpush1.bf16.msra.mxu0 0
          %1170 = vmatprep.subr.bf16.mxu0 0
          %1171 = vmatpush1.bf16.msra.mxu0 0
          %1172 = vmatprep.subr.bf16.mxu0 0
          %1173 = vmatpush1.bf16.msra.mxu0 0
          %1174 = vmatprep.subr.bf16.mxu0 0
          %1175 = vmatpush1.bf16.msra.mxu0 0
          %1176 = vmatprep.subr.bf16.mxu0 0
          %1177 = vmatpush1.bf16.msra.mxu0 0
          %1178 = vmatprep.mubr.bf16.mxu0 0
          %1179 = vmatmul.mubr.bf16.gmra.mrb[0].mxu0 %v1131
          %v1180 = vpop.f32.mrb[0].mxu0
          %v1181 = vadd.f32 0.0, %v1180
          %v1182 = vpop.f32.mrb[0].mxu0
          %v1183 = vadd.f32 0.0, %v1182
          %v1184 = vpop.f32.mrb[0].mxu0
          %v1185 = vadd.f32 0.0, %v1184
          %v1186 = vpop.f32.mrb[0].mxu0
          %v1187 = vadd.f32 0.0, %v1186
          %1188 = vmatprep.mubr.bf16.mxu0 0
          %1189 = vmatmul.mubr.bf16.gmra.mrb[0].mxu0 %v1134
          %v1190 = vpop.f32.mrb[0].mxu0
          %v1191 = vadd.f32 0.0, %v1190
          %v1192 = vpop.f32.mrb[0].mxu0
          %v1193 = vadd.f32 0.0, %v1192
          %v1194 = vpop.f32.mrb[0].mxu0
          %v1195 = vadd.f32 0.0, %v1194
          %v1196 = vpop.f32.mrb[0].mxu0
          %v1197 = vadd.f32 0.0, %v1196
          %1198 = vdwg.mxu0
          %1199 = vmatprep.subr.bf16.mxu0 0
          %1200 = vmatpush1.bf16.msra.mxu0 %v1122
          %1201 = vmatprep.subr.bf16.mxu0 0
          %1202 = vmatpush1.bf16.msra.mxu0 %v1144
          %1203 = vmatprep.subr.bf16.mxu0 0
          %1204 = vmatpush1.bf16.msra.mxu0 0
          %1205 = vmatprep.subr.bf16.mxu0 0
          %1206 = vmatpush1.bf16.msra.mxu0 0
          %1207 = vmatprep.subr.bf16.mxu0 0
          %1208 = vmatpush1.bf16.msra.mxu0 0
          %1209 = vmatprep.subr.bf16.mxu0 0
          %1210 = vmatpush1.bf16.msra.mxu0 0
          %1211 = vmatprep.subr.bf16.mxu0 0
          %1212 = vmatpush1.bf16.msra.mxu0 0
          %1213 = vmatprep.subr.bf16.mxu0 0
          %1214 = vmatpush1.bf16.msra.mxu0 0
          %1215 = vmatprep.subr.bf16.mxu0 0
          %1216 = vmatpush1.bf16.msra.mxu0 0
          %1217 = vmatprep.subr.bf16.mxu0 0
          %1218 = vmatpush1.bf16.msra.mxu0 0
          %1219 = vmatprep.subr.bf16.mxu0 0
          %1220 = vmatpush1.bf16.msra.mxu0 0
          %1221 = vmatprep.subr.bf16.mxu0 0
          %1222 = vmatpush1.bf16.msra.mxu0 0
          %1223 = vmatprep.subr.bf16.mxu0 0
          %1224 = vmatpush1.bf16.msra.mxu0 0
          %1225 = vmatprep.subr.bf16.mxu0 0
          %1226 = vmatpush1.bf16.msra.mxu0 0
          %1227 = vmatprep.subr.bf16.mxu0 0
          %1228 = vmatpush1.bf16.msra.mxu0 0
          %1229 = vmatprep.subr.bf16.mxu0 0
          %1230 = vmatpush1.bf16.msra.mxu0 0
          %1231 = vmatprep.mubr.bf16.mxu0 0
          %1232 = vmatmul.mubr.bf16.gmra.mrb[0].mxu0 %v1131
          %v1233 = vpop.f32.mrb[0].mxu0
          %v1234 = vadd.f32 0.0, %v1233
          %v1235 = vpop.f32.mrb[0].mxu0
          %v1236 = vpop.f32.mrb[0].mxu0
          %v1237 = vadd.f32 0.0, %v1236
          %v1238 = vpop.f32.mrb[0].mxu0
          %1239 = vmatprep.mubr.bf16.mxu0 0
          %1240 = vmatmul.mubr.bf16.gmra.mrb[0].mxu0 %v1134
          %v1241 = vpop.f32.mrb[0].mxu0
          %v1242 = vadd.f32 0.0, %v1241
          %v1243 = vpop.f32.mrb[0].mxu0
          %v1244 = vpop.f32.mrb[0].mxu0
          %v1245 = vadd.f32 0.0, %v1244
          %v1246 = vpop.f32.mrb[0].mxu0
          %1247 = vdwg.mxu0
          %v1248 = vmul.f32 %v1018, %v1181
          %v1249 = vmul.f32 %v1020, %v1183
          %v1250 = vmul.f32 %v1071, %v1234
          %v1251 = vmul.f32 %v1022, %v1185
          %v1252 = vmul.f32 %v1024, %v1187
          %v1253 = vmul.f32 %v1074, %v1237
          %v1254 = vmul.f32 %v1028, %v1191
          %v1255 = vmul.f32 %v1030, %v1193
          %v1256 = vmul.f32 %v1079, %v1242
          %v1257 = vmul.f32 %v1032, %v1195
          %v1258 = vmul.f32 %v1034, %v1197
          %v1259 = vmul.f32 %v1082, %v1245
          %v1260 = vpack.c.bf16 %v1252, %v1249
          %v1261 = vpack.c.bf16 %v1258, %v1255
          %v1262 = vpack.c.bf16 %v1253, %v1250
          %v1263 = vpack.c.bf16 %v1259, %v1256
          %v1264 = vpack.c.bf16 %v1251, %v1248
          %v1265 = vpack.c.bf16 %v1257, %v1254
          %1266 = vst [vmem:[#allocation2] sm:$0xff] %v1264
          %1267 = vst [vmem:[#allocation2 + $0x20] sm:$0xff] %v1265
          %v1268 = vld [vmem:[%s593] sm:$0xff]
          %v1269 = vld [vmem:[%s593 + $0x8] sm:$0xf]
          %v1270 = vld [vmem:[%s593 + $0xc] sm:$0xff]
          %v1271 = vld [vmem:[%s593 + $0x14] sm:$0xf]
          %v1272 = vld [vmem:[%s593 + $0x18] sm:$0xff]
          %v1273 = vld [vmem:[%s593 + $0x20] sm:$0xf]
          %v1274 = vld [vmem:[%s593 + $0x24] sm:$0xff]
          %v1275 = vld [vmem:[%s593 + $0x2c] sm:$0xf]
          %v1276 = vld [vmem:[%s617] sm:$0xff]
          %v1277 = vld [vmem:[%s617 + $0x8] sm:$0xff]
          %v1278 = vld [vmem:[%s617 + $0x10] sm:$0xff]
          %v1279 = vld [vmem:[%s617 + $0x18] sm:$0xff]
          %v1280 = vpack.c.bf16 %v1277, %v1276
          %v1281 = vpack.c.bf16 %v1279, %v1278
          %v1286 = vunpack.c.l.b16 %v1268
          %v1287 = vunpack.c.l.b16 %v1270
          %v1288 = vunpack.c.l.b16 %v1272
          %v1289 = vunpack.c.l.b16 %v1274
          %v1290 = vpack.c.b16 %v1287, %v1286
          %v1291 = vpack.c.b16 %v1289, %v1288
          %v1294 = vmul.bf16 %v1260, %v1290
          %v1295 = vmul.bf16 %v1261, %v1291
          %1297 = vset.pattern.permute.xlu0 0
          %1298 = vperm.xlu0 %1297, %v1280
          %v1299 = vpop.permute.xlu0 %1298
          %1302 = vset.pattern.permute.xlu0 0
          %1303 = vperm.xlu0 %1302, %v1281
          %v1304 = vpop.permute.xlu0 %1303
          %v1306 = vmul.bf16 %v1299, %v1262
          %v1307 = vmul.bf16 %v1304, %v1263
          %v1308 = vadd.bf16 %v1294, %v1306
          %v1309 = vadd.bf16 %v1295, %v1307
          %1310 = vst [vmem:[#allocation2 + $0x8] sm:$0xff] %v1308
          %1311 = vst [vmem:[#allocation2 + $0x28] sm:$0xff] %v1309
          %v1312 = vunpack.c.h.b16 %v1268
          %v1313 = vunpack.c.h.b16 %v1270
          %v1314 = vunpack.c.h.b16 %v1272
          %v1315 = vunpack.c.h.b16 %v1274
          %v1316 = vpack.c.b16 %v1313, %v1312
          %v1317 = vpack.c.b16 %v1315, %v1314
          %v1320 = vmul.bf16 %v1260, %v1316
          %v1321 = vmul.bf16 %v1261, %v1317
          %1322 = vset.pattern.permute.xlu0 1
          %1323 = vperm.xlu0 %1322, %v1280
          %v1324 = vpop.permute.xlu0 %1323
          %1326 = vset.pattern.permute.xlu0 1
          %1327 = vperm.xlu0 %1326, %v1281
          %v1328 = vpop.permute.xlu0 %1327
          %v1330 = vmul.bf16 %v1324, %v1262
          %v1331 = vmul.bf16 %v1328, %v1263
          %v1332 = vadd.bf16 %v1320, %v1330
          %v1333 = vadd.bf16 %v1321, %v1331
          %1334 = vst [vmem:[#allocation2 + $0x10] sm:$0xff] %v1332
          %1335 = vst [vmem:[#allocation2 + $0x30] sm:$0xff] %v1333
          %v1340 = vunpack.c.l.b16 %v1269
          %v1341 = vunpack.c.l.b16 %v1271
          %v1342 = vunpack.c.l.b16 %v1273
          %v1343 = vunpack.c.l.b16 %v1275
          %v1344 = vpack.c.b16 %v1341, %v1340
          %v1345 = vpack.c.b16 %v1343, %v1342
          %v1348 = vmul.bf16 %v1260, %v1344
          %v1349 = vmul.bf16 %v1261, %v1345
          %1350 = vset.pattern.permute.xlu0 2
          %1351 = vperm.xlu0 %1350, %v1280
          %v1352 = vpop.permute.xlu0 %1351
          %1354 = vset.pattern.permute.xlu0 2
          %1355 = vperm.xlu0 %1354, %v1281
          %v1356 = vpop.permute.xlu0 %1355
          %v1358 = vmul.bf16 %v1352, %v1262
          %v1359 = vmul.bf16 %v1356, %v1263
          %v1360 = vadd.bf16 %v1348, %v1358
          %v1361 = vadd.bf16 %v1349, %v1359
          %1362 = vst [vmem:[#allocation2 + $0x18] sm:$0xff] %v1360
          %1363 = vst [vmem:[#allocation2 + $0x38] sm:$0xff] %v1361
          %v1364 = vld [vmem:[%s495] sm:$0x1]
          %s1365 = smul.u32 %s47, 8
          %v1366 = vstv %s1365
          %v1367 = vsub.s32 %v1364, %v1366
          %v1368 = vld [vmem:[#allocation3] sm:$0xff]
          %v1369 = vlaneseq
          %v1370 = vshrl.u32 %v1369, 7
          %v1371 = vsub.s32 0, %v1370
          %v1372 = vrot.slane %v1367, %v1371
          %vm1373 = vcmp.eq.s32.totalorder %v1368, %v1372
          %v1374 = vsel %vm1373, 1, 0
          %v1375 = vcvt.s32.f32 %v1374
          %v1376 = vpack.c.bf16 %v1375, %v1375
          %v1377 = vld [vmem:[%s577] sm:$0xff]
          %v1378 = vld [vmem:[%s577 + $0x8] sm:$0xff]
          %v1379 = vld [vmem:[%s577 + $0x10] sm:$0xff]
          %v1380 = vld [vmem:[%s577 + $0x18] sm:$0xff]
          %v1381 = vld [vmem:[#allocation2] sm:$0xff]
          %v1382 = vld [vmem:[#allocation2 + $0x8] sm:$0xff]
          %v1383 = vld [vmem:[#allocation2 + $0x10] sm:$0xff]
          %v1384 = vld [vmem:[#allocation2 + $0x18] sm:$0xff]
          %v1385 = vld [vmem:[#allocation2 + $0x20] sm:$0xff]
          %v1386 = vld [vmem:[#allocation2 + $0x28] sm:$0xff]
          %v1387 = vld [vmem:[#allocation2 + $0x30] sm:$0xff]
          %v1388 = vld [vmem:[#allocation2 + $0x38] sm:$0xff]
          %vm1389 = vcmask 261120
          %v1391 = vsel %vm1389, %v1376, 0
          %1393 = vmatprep.subr.bf16.mxu0 %v1382
          %1394 = vmatpush1.bf16.msra.mxu0 %v1381
          %1395 = vmatprep.subr.bf16.mxu0 %v1386
          %1396 = vmatpush1.bf16.msra.mxu0 %v1385
          %1397 = vmatprep.subr.bf16.mxu0 0
          %1398 = vmatpush1.bf16.msra.mxu0 0
          %1399 = vmatprep.subr.bf16.mxu0 0
          %1400 = vmatpush1.bf16.msra.mxu0 0
          %1401 = vmatprep.subr.bf16.mxu0 0
          %1402 = vmatpush1.bf16.msra.mxu0 0
          %1403 = vmatprep.subr.bf16.mxu0 0
          %1404 = vmatpush1.bf16.msra.mxu0 0
          %1405 = vmatprep.subr.bf16.mxu0 0
          %1406 = vmatpush1.bf16.msra.mxu0 0
          %1407 = vmatprep.subr.bf16.mxu0 0
          %1408 = vmatpush1.bf16.msra.mxu0 0
          %1409 = vmatprep.subr.bf16.mxu0 0
          %1410 = vmatpush1.bf16.msra.mxu0 0
          %1411 = vmatprep.subr.bf16.mxu0 0
          %1412 = vmatpush1.bf16.msra.mxu0 0
          %1413 = vmatprep.subr.bf16.mxu0 0
          %1414 = vmatpush1.bf16.msra.mxu0 0
          %1415 = vmatprep.subr.bf16.mxu0 0
          %1416 = vmatpush1.bf16.msra.mxu0 0
          %1417 = vmatprep.subr.bf16.mxu0 0
          %1418 = vmatpush1.bf16.msra.mxu0 0
          %1419 = vmatprep.subr.bf16.mxu0 0
          %1420 = vmatpush1.bf16.msra.mxu0 0
          %1421 = vmatprep.subr.bf16.mxu0 0
          %1422 = vmatpush1.bf16.msra.mxu0 0
          %1423 = vmatprep.subr.bf16.mxu0 0
          %1424 = vmatpush1.bf16.msra.mxu0 0
          %1425 = vmatprep.mubr.bf16.mxu0 0
          %1426 = vmatmul.mubr.bf16.gmra.mrb[0].mxu0 %v1391
          %v1427 = vpop.f32.mrb[0].mxu0
          %v1428 = vadd.f32 0.0, %v1427
          %v1429 = vpop.f32.mrb[0].mxu0
          %v1430 = vadd.f32 0.0, %v1429
          %v1431 = vpop.f32.mrb[0].mxu0
          %v1432 = vpop.f32.mrb[0].mxu0
          %1433 = vdwg.mxu0
          %1434 = vmatprep.subr.bf16.mxu0 %v1384
          %1435 = vmatpush1.bf16.msra.mxu0 %v1383
          %1436 = vmatprep.subr.bf16.mxu0 %v1388
          %1437 = vmatpush1.bf16.msra.mxu0 %v1387
          %1438 = vmatprep.subr.bf16.mxu0 0
          %1439 = vmatpush1.bf16.msra.mxu0 0
          %1440 = vmatprep.subr.bf16.mxu0 0
          %1441 = vmatpush1.bf16.msra.mxu0 0
          %1442 = vmatprep.subr.bf16.mxu0 0
          %1443 = vmatpush1.bf16.msra.mxu0 0
          %1444 = vmatprep.subr.bf16.mxu0 0
          %1445 = vmatpush1.bf16.msra.mxu0 0
          %1446 = vmatprep.subr.bf16.mxu0 0
          %1447 = vmatpush1.bf16.msra.mxu0 0
          %1448 = vmatprep.subr.bf16.mxu0 0
          %1449 = vmatpush1.bf16.msra.mxu0 0
          %1450 = vmatprep.subr.bf16.mxu0 0
          %1451 = vmatpush1.bf16.msra.mxu0 0
          %1452 = vmatprep.subr.bf16.mxu0 0
          %1453 = vmatpush1.bf16.msra.mxu0 0
          %1454 = vmatprep.subr.bf16.mxu0 0
          %1455 = vmatpush1.bf16.msra.mxu0 0
          %1456 = vmatprep.subr.bf16.mxu0 0
          %1457 = vmatpush1.bf16.msra.mxu0 0
          %1458 = vmatprep.subr.bf16.mxu0 0
          %1459 = vmatpush1.bf16.msra.mxu0 0
          %1460 = vmatprep.subr.bf16.mxu0 0
          %1461 = vmatpush1.bf16.msra.mxu0 0
          %1462 = vmatprep.subr.bf16.mxu0 0
          %1463 = vmatpush1.bf16.msra.mxu0 0
          %1464 = vmatprep.subr.bf16.mxu0 0
          %1465 = vmatpush1.bf16.msra.mxu0 0
          %1466 = vmatprep.mubr.bf16.mxu0 0
          %1467 = vmatmul.mubr.bf16.gmra.mrb[0].mxu0 %v1391
          %v1468 = vpop.f32.mrb[0].mxu0
          %v1469 = vadd.f32 0.0, %v1468
          %v1470 = vpop.f32.mrb[0].mxu0
          %v1471 = vadd.f32 0.0, %v1470
          %v1472 = vpop.f32.mrb[0].mxu0
          %v1473 = vpop.f32.mrb[0].mxu0
          %1474 = vdwg.mxu0
          %v1475 = vadd.f32 %v1377, %v1428
          %v1476 = vadd.f32 %v1378, %v1430
          %v1477 = vadd.f32 %v1379, %v1469
          %v1478 = vadd.f32 %v1380, %v1471
          %1479 = vst [vmem:[%s577] sm:$0xff] %v1475
          %1480 = vst [vmem:[%s577 + $0x8] sm:$0xff] %v1476
          %1481 = vst [vmem:[%s577 + $0x10] sm:$0xff] %v1477
          %1482 = vst [vmem:[%s577 + $0x18] sm:$0xff] %v1478
        $region84: #{tpu_custom_call.1} parent=59 // pred_fallthru
          _
        %s1483 = sand.u32 %s328, 1
        %s1484 = scalar_lea.sflag [#allocation9], %s1483
        %s1485 = sand.u32 %s328, 1
        %s1486 = smul.addr %s1485, 32
        %s1487 = scalar_lea.vmem [#allocation15], %s1486
        // Predicated region
        $region85: #{tpu_custom_call.1} parent=59 // pred_check
          %p1488 = pneg %p338
        $region86: #{tpu_custom_call.1} parent=59 // pred_check_branch
          %1490 = sbr.rel (%p1488) target = $region88
        $region87: #{tpu_custom_call.1} parent=59 // pred_region
          %s1492 = ssub.s32 512, 512
          %1493 = vsyncadd %s1484, %s1492
          %s1494 = smul.addr %s47, 4
          %s1495 = smul.addr %s1494, 128
          %s1496 = scalar_lea.hbm %s12, %s1495
          %s1498 = sshll.u32 %s1487, 4
          %s1499 = int_to_ptr.vmem [resolvable:$true] %s1498
          %1501 = dma.vmem_to_hbm [thread:$0]  %s1499, 512, %s1496, %s1484
        $region88: #{tpu_custom_call.1} parent=59 // pred_fallthru
          _
      $region60: #{tpu_custom_call.1} parent=5 // pred_fallthru
        _
      %p1502 = scmp.le.s32.totalorder 2, %s38
      // Predicated region
      $region89: #{tpu_custom_call.1} parent=5 // pred_check
        %p1503 = pneg %p1502
      $region90: #{tpu_custom_call.1} parent=5 // pred_check_branch
        %1505 = sbr.rel (%p1503) target = $region92
      $region91: #{tpu_custom_call.1} parent=5 // pred_region
        %s1506 = ssub.s32 %s38, 2
        // Predicated region
        $region93: #{tpu_custom_call.1} parent=91 // pred_check
          %p1507 = pneg %p344
        $region94: #{tpu_custom_call.1} parent=91 // pred_check_branch
          %1509 = sbr.rel (%p1507) target = $region96
        $region95: #{tpu_custom_call.1} parent=91 // pred_region
          %s1510 = sand.u32 %s329, 1
          %s1511 = scalar_lea.sflag [#allocation9], %s1510
          %s1512 = sand.u32 %s329, 1
          %s1513 = smul.addr %s1512, 32
          %s1514 = scalar_lea.vmem [#allocation15], %s1513
          %1515 = dma.done %s1511, 512
        $region96: #{tpu_custom_call.1} parent=91 // pred_fallthru
          _
      $region92: #{tpu_custom_call.1} parent=5 // pred_fallthru
        _
    $region6: #{tpu_custom_call.1} parent=1 // loop_footer
      %s42 = sadd.s32 1, %s38
    $region7: #{tpu_custom_call.1} parent=1 // loop_footer_branch
      %37 = sbr.rel target = $region3
    $region8: #{tpu_custom_call.1} parent=1 // loop_exit
      _
    %1516 = vsyncpa [#allocation8], 1
    %s1517 = scalar_lea.sflag [#allocation8], 1
    %1518 = vsyncpa %s1517, 1
    %1519 = vsyncpa [#allocation11], 1
    %s1520 = scalar_lea.sflag [#allocation11], 1
    %1521 = vsyncpa %s1520, 1
    %1522 = vsyncpa [#allocation14], 1
    %1523 = vsyncpa [#allocation9], 1
    %s1524 = scalar_lea.sflag [#allocation9], 1
    %1525 = vsyncpa %s1524, 1

</llo_original>
